<compile_context>
chip_gen: v6e
topology: v6e:2x2x1
jax: 0.10.0
libtpu: 0.0.40
codegen_flags: <defaults>
</compile_context>

<pallas_src>
import functools

import jax
import jax.numpy as jnp
from jax import lax
from jax.experimental import pallas as pl
from jax.experimental.pallas import tpu as pltpu


def _mha_mean_kernel(x_ref, w_in_ref, b_in_ref, w_out_ref, b_out_ref, o_ref,
                     *, num_heads, batch_tile, seq_len):
    # x_ref     : (Bt*L, E)   bf16 token-major activations of this batch tile
    # w_in_ref  : (3H, Dh, E) bf16 in_proj_weight, head-major [q heads | k heads | v heads]
    # b_in_ref  : (3H, Dh)    f32  in_proj_bias, same ordering
    # w_out_ref : (H, Dh, E)  f32  out_proj.weight^T split per head along its Dh rows
    # b_out_ref : (1, E)      f32
    # o_ref     : (1, Bt, E)  mean-over-queries attention output per sequence
    H, Bt, L = num_heads, batch_tile, seq_len
    Dh = w_in_ref.shape[1]
    E = w_in_ref.shape[2]
    scale = Dh ** -0.5
    nt = (((1,), (1,)), ((), ()))        # contract last dim of both operands (A @ B^T)

    x = x_ref[...]                       # (Bt*L, E) bf16 — MXU operand
    w_in = w_in_ref[...]                 # (3H, Dh, E) bf16
    b_in = b_in_ref[...]                 # (3H, Dh) f32
    w_out = w_out_ref[...]               # (H, Dh, E) f32
    b_out = b_out_ref[...]               # (1, E) f32

    # Accumulates  mean_q(attn) @ W_out^T  head by head for every sequence.
    acc = jnp.zeros((Bt, E), jnp.float32)

    for h in range(H):                   # static unroll over heads
        # Per-head Q/K/V projections over the whole token block:
        # bf16 x bf16 on the MXU with f32 accumulation (dominant FLOPs).
        q = lax.dot_general(x, w_in[h], nt, preferred_element_type=jnp.float32)
        q = (q + b_in[h:h + 1, :]) * scale                                    # (Bt*L, Dh)
        k = lax.dot_general(x, w_in[H + h], nt,
                            preferred_element_type=jnp.float32)
        k = k + b_in[H + h:H + h + 1, :]                                      # (Bt*L, Dh)
        v = lax.dot_general(x, w_in[2 * H + h], nt,
                            preferred_element_type=jnp.float32)
        v = v + b_in[2 * H + h:2 * H + h + 1, :]                              # (Bt*L, Dh)

        # Tokens are b-major, so this split is layout-preserving when L % 8 == 0.
        q3 = q.reshape(Bt, L, Dh)
        k3 = k.reshape(Bt, L, Dh)
        v3 = v.reshape(Bt, L, Dh)

        # Scores + numerically stable softmax, batched over the whole tile (f32).
        s = jnp.einsum('bqd,bkd->bqk', q3, k3,
                       preferred_element_type=jnp.float32)                    # (Bt, L, L)
        s = s - jnp.max(s, axis=-1, keepdims=True)
        p = jnp.exp(s)
        p = p * pl.reciprocal(jnp.sum(p, axis=-1, keepdims=True), approx=True)

        # Mean over queries BEFORE touching V:  mean_q(P V) == mean_rows(P) V.
        pm = jnp.mean(p, axis=1, keepdims=True)                               # (Bt, 1, L)
        hm = jnp.einsum('bql,bld->bqd', pm, v3,
                        preferred_element_type=jnp.float32)                   # (Bt, 1, Dh)

        # Fold this head straight into the output projection via its (Dh, E)
        # block of W_out^T (no lane-concatenation of heads).
        acc = acc + jnp.dot(hm.reshape(Bt, Dh), w_out[h],
                            preferred_element_type=jnp.float32)               # (Bt, E)

    # One lane-dense (Bt, E) store for the whole tile.
    o_ref[0] = acc + b_out


def _pick_batch_tile(B, L, E, itemsize=2):
    """Sequences per grid step.

    Prefer two grid steps (one per TensorCore on dual-core chips) packing B//2
    sequences each to amortize per-step pipeline overhead; otherwise fall back
    to a single step over the whole batch (block == full array is always legal).
    """
    if B % 2 == 0:
        bt = B // 2
        if (bt * L) % 8 == 0 and bt * L * E * itemsize <= (8 << 20):
            return bt
    return B


def self_attention_module(x, w_in, b_in, w_out, b_out, num_heads, batch_tile=None):
    """x: (B, 1, E, L) float32 (PyTorch NCHW-style input). Returns (B, 1, E, 1)."""
    B, one, E, L = x.shape
    assert one == 1 and E % num_heads == 0
    Dh = E // num_heads

    if batch_tile is None:
        batch_tile = _pick_batch_tile(B, L, E)
    assert B % batch_tile == 0
    num_tiles = B // batch_tile

    # Token-major activations, one fused transpose+reshape+cast: (B,1,E,L) -> (B*L, E) bf16.
    xs = jnp.transpose(x[:, 0], (0, 2, 1)).reshape(B * L, E).astype(jnp.bfloat16)

    # Parameter prep (tiny, one XLA pass):
    #  * in_proj weights as bf16, head-major (3H, Dh, E) -> leading-dim indexing in
    #    the kernel instead of sub-tile sublane slices of a packed bf16 matrix.
    #  * out_proj.weight^T split per head as (H, Dh, E), kept f32 (out-proj is tiny).
    w_in_r = jnp.asarray(w_in).reshape(3 * num_heads, Dh, E).astype(jnp.bfloat16)
    b_in_r = jnp.asarray(b_in, jnp.float32).reshape(3 * num_heads, Dh)
    w_out_r = jnp.asarray(w_out, jnp.float32).T.reshape(num_heads, Dh, E)
    b_out_r = jnp.asarray(b_out, jnp.float32).reshape(1, E)

    kernel = functools.partial(_mha_mean_kernel, num_heads=num_heads,
                               batch_tile=batch_tile, seq_len=L)

    out = pl.pallas_call(
        kernel,
        out_shape=jax.ShapeDtypeStruct((num_tiles, batch_tile, E), jnp.float32),
        grid_spec=pltpu.PrefetchScalarGridSpec(
            num_scalar_prefetch=0,
            grid=(num_tiles,),
            in_specs=[
                pl.BlockSpec((batch_tile * L, E), lambda t: (t, 0)),            # tokens of tile t
                pl.BlockSpec((3 * num_heads, Dh, E), lambda t: (0, 0, 0)),       # W_in (head-major)
                pl.BlockSpec((3 * num_heads, Dh), lambda t: (0, 0)),             # in-proj bias
                pl.BlockSpec((num_heads, Dh, E), lambda t: (0, 0, 0)),           # W_out^T (per head)
                pl.BlockSpec((1, E), lambda t: (0, 0)),                          # out-proj bias
            ],
            out_specs=pl.BlockSpec((1, batch_tile, E), lambda t: (t, 0, 0)),
        ),
        compiler_params=pltpu.CompilerParams(
            dimension_semantics=("parallel",),          # batch tiles are independent
            vmem_limit_bytes=32 * 1024 * 1024,          # explicit budget (safe on v7x's 64 MiB)
        ),
    )(xs, w_in_r, b_in_r, w_out_r, b_out_r)

    # attn_output.mean(dim=0).view(B, 1, -1, 1)
    return out.reshape(B, E).reshape(B, 1, E, 1)


def _reference(x, w_in, b_in, w_out, b_out, num_heads, param_dtype=jnp.bfloat16):
    """Pure-JAX reference matching nn.MultiheadAttention forward (q=k=v).

    x and in_proj_weight are rounded through `param_dtype` exactly like the kernel
    feeds them to the MXU, so the comparison isolates kernel-side approximations
    (approx softmax reciprocal, accumulation order)."""
    B, _, E, L = x.shape
    Dh = E // num_heads
    rnd = lambda a: jnp.asarray(a).astype(param_dtype).astype(jnp.float32)

    xs = rnd(jnp.transpose(x, (3, 0, 1, 2))[:, :, 0, :])     # (L, B, E)
    w_in_q = rnd(w_in)
    qkv = xs @ w_in_q.T + b_in                               # (L, B, 3E)
    q, k, v = jnp.split(qkv, 3, axis=-1)
    qh = q.reshape(L, B, num_heads, Dh)
    kh = k.reshape(L, B, num_heads, Dh)
    vh = v.reshape(L, B, num_heads, Dh)
    s = jnp.einsum('lbhd,mbhd->bhlm', qh * (Dh ** -0.5), kh)
    p = jax.nn.softmax(s, axis=-1)
    o = jnp.einsum('bhlm,mbhd->lbhd', p, vh).reshape(L, B, E)
    out = o @ jnp.asarray(w_out, jnp.float32).T + b_out      # (L, B, E)
    return out.mean(axis=0).reshape(B, 1, E, 1)


if __name__ == "__main__":
    # Small shapes consistent with the module's forward: x is (B, 1, E, L).
    # B=4 exercises the batched-tile path (2 sequences per grid step, 2 steps).
    B, E, L, H = 4, 32, 8, 4

    key = jax.random.PRNGKey(0)
    kx, kwi, kbi, kwo, kbo = jax.random.split(key, 5)

    x = jax.random.normal(kx, (B, 1, E, L), dtype=jnp.float32)

    # Synthetic parameters with nn.MultiheadAttention(E, H) shapes:
    #   in_proj_weight (3E, E), in_proj_bias (3E,), out_proj.weight (E, E), out_proj.bias (E,)
    w_in = jax.random.normal(kwi, (3 * E, E), dtype=jnp.float32) * (E ** -0.5)
    b_in = jax.random.normal(kbi, (3 * E,), dtype=jnp.float32) * 0.01
    w_out = jax.random.normal(kwo, (E, E), dtype=jnp.float32) * (E ** -0.5)
    b_out = jax.random.normal(kbo, (E,), dtype=jnp.float32) * 0.01

    y = self_attention_module(x, w_in, b_in, w_out, b_out, H)
    y = jax.block_until_ready(y)

    y_ref = _reference(x, w_in, b_in, w_out, b_out, H)
    assert y.shape == (B, 1, E, 1)
    # Tolerance covers the deliberate approximations (EUP approx reciprocal in the
    # softmax; bf16 MXU inputs are mirrored in the reference); real math bugs are O(1).
    max_err = float(jnp.max(jnp.abs(y - y_ref)))
    assert jnp.allclose(y, y_ref, rtol=5e-3, atol=5e-3), (
        f"mismatch vs JAX reference (max |err| = {max_err})")

    print("KERNEL_OK")
</pallas_src>

<mosaic_0001>
module attributes {stable_mosaic.version = 11 : i64} {
  func.func @_mha_mean_kernel(%arg0: i32, %arg1: memref<16x32xbf16, #tpu.memory_space<vmem>>, %arg2: memref<12x8x32xbf16, #tpu.memory_space<vmem>>, %arg3: memref<12x8xf32, #tpu.memory_space<vmem>>, %arg4: memref<4x8x32xf32, #tpu.memory_space<vmem>>, %arg5: memref<1x32xf32, #tpu.memory_space<vmem>>, %arg6: memref<1x2x32xf32, #tpu.memory_space<vmem>>) attributes {dimension_semantics = [#tpu.dimension_semantics<parallel>], iteration_bounds = array<i64: 2>, scalar_prefetch = 0 : i64, scratch_operands = 0 : i64, tpu.core_type = #tpu.core_type<tc>, window_params = [{transform_indices = @transform_0, window_bounds = array<i64: 16, 32>}, {pipeline_mode = #tpu.pipeline_mode<synchronous>, transform_indices = @transform_1, window_bounds = array<i64: 12, 8, 32>}, {pipeline_mode = #tpu.pipeline_mode<synchronous>, transform_indices = @transform_2, window_bounds = array<i64: 12, 8>}, {pipeline_mode = #tpu.pipeline_mode<synchronous>, transform_indices = @transform_3, window_bounds = array<i64: 4, 8, 32>}, {pipeline_mode = #tpu.pipeline_mode<synchronous>, transform_indices = @transform_4, window_bounds = array<i64: 1, 32>}, {transform_indices = @transform_5, window_bounds = array<i64: 1, 2, 32>}]} {
    %c0 = arith.constant 0 : index
    %c0_0 = arith.constant 0 : index
    %0 = vector.load %arg1[%c0, %c0_0] : memref<16x32xbf16, #tpu.memory_space<vmem>>, vector<16x32xbf16>
    %c0_1 = arith.constant 0 : index
    %c0_2 = arith.constant 0 : index
    %c0_3 = arith.constant 0 : index
    %1 = vector.load %arg2[%c0_1, %c0_2, %c0_3] : memref<12x8x32xbf16, #tpu.memory_space<vmem>>, vector<12x8x32xbf16>
    %c0_4 = arith.constant 0 : index
    %c0_5 = arith.constant 0 : index
    %2 = vector.load %arg3[%c0_4, %c0_5] : memref<12x8xf32, #tpu.memory_space<vmem>>, vector<12x8xf32>
    %c0_6 = arith.constant 0 : index
    %c0_7 = arith.constant 0 : index
    %c0_8 = arith.constant 0 : index
    %3 = vector.load %arg4[%c0_6, %c0_7, %c0_8] : memref<4x8x32xf32, #tpu.memory_space<vmem>>, vector<4x8x32xf32>
    %c0_9 = arith.constant 0 : index
    %c0_10 = arith.constant 0 : index
    %4 = vector.load %arg5[%c0_9, %c0_10] : memref<1x32xf32, #tpu.memory_space<vmem>>, vector<1x32xf32>
    %cst = arith.constant 0.000000e+00 : f32
    %5 = vector.broadcast %cst : f32 to vector<2x32xf32>
    %6 = vector.extract_strided_slice %1 {offsets = [0, 0, 0], sizes = [1, 8, 32], strides = [1, 1, 1]} : vector<12x8x32xbf16> to vector<1x8x32xbf16>
    %7 = vector.shape_cast %6 : vector<1x8x32xbf16> to vector<8x32xbf16>
    %cst_11 = arith.constant dense<0.000000e+00> : vector<16x8xf32>
    %8 = tpu.matmul %0, %7, %cst_11 {dimension_numbers = #tpu.dot_dimension_numbers<[1], [1], [0], [0], [0, 0, 1, 0], [], []>} : vector<16x32xbf16>, vector<8x32xbf16>, vector<16x8xf32> -> vector<16x8xf32>
    %9 = vector.extract_strided_slice %2 {offsets = [0, 0], sizes = [1, 8], strides = [1, 1]} : vector<12x8xf32> to vector<1x8xf32>
    %10 = vector.broadcast %9 : vector<1x8xf32> to vector<16x8xf32>
    %11 = arith.addf %8, %10 : vector<16x8xf32>
    %cst_12 = arith.constant 0.353553385 : f32
    %12 = vector.broadcast %cst_12 : f32 to vector<16x8xf32>
    %13 = arith.mulf %11, %12 : vector<16x8xf32>
    %14 = vector.extract_strided_slice %1 {offsets = [4, 0, 0], sizes = [1, 8, 32], strides = [1, 1, 1]} : vector<12x8x32xbf16> to vector<1x8x32xbf16>
    %15 = vector.shape_cast %14 : vector<1x8x32xbf16> to vector<8x32xbf16>
    %cst_13 = arith.constant dense<0.000000e+00> : vector<16x8xf32>
    %16 = tpu.matmul %0, %15, %cst_13 {dimension_numbers = #tpu.dot_dimension_numbers<[1], [1], [0], [0], [0, 0, 1, 0], [], []>} : vector<16x32xbf16>, vector<8x32xbf16>, vector<16x8xf32> -> vector<16x8xf32>
    %17 = vector.extract_strided_slice %2 {offsets = [4, 0], sizes = [1, 8], strides = [1, 1]} : vector<12x8xf32> to vector<1x8xf32>
    %18 = vector.broadcast %17 : vector<1x8xf32> to vector<16x8xf32>
    %19 = arith.addf %16, %18 : vector<16x8xf32>
    %20 = vector.extract_strided_slice %1 {offsets = [8, 0, 0], sizes = [1, 8, 32], strides = [1, 1, 1]} : vector<12x8x32xbf16> to vector<1x8x32xbf16>
    %21 = vector.shape_cast %20 : vector<1x8x32xbf16> to vector<8x32xbf16>
    %cst_14 = arith.constant dense<0.000000e+00> : vector<16x8xf32>
    %22 = tpu.matmul %0, %21, %cst_14 {dimension_numbers = #tpu.dot_dimension_numbers<[1], [1], [0], [0], [0, 0, 1, 0], [], []>} : vector<16x32xbf16>, vector<8x32xbf16>, vector<16x8xf32> -> vector<16x8xf32>
    %23 = vector.extract_strided_slice %2 {offsets = [8, 0], sizes = [1, 8], strides = [1, 1]} : vector<12x8xf32> to vector<1x8xf32>
    %24 = vector.broadcast %23 : vector<1x8xf32> to vector<16x8xf32>
    %25 = arith.addf %22, %24 : vector<16x8xf32>
    %26 = vector.shape_cast %13 : vector<16x8xf32> to vector<2x8x8xf32>
    %27 = vector.shape_cast %19 : vector<16x8xf32> to vector<2x8x8xf32>
    %28 = vector.shape_cast %25 : vector<16x8xf32> to vector<2x8x8xf32>
    "tpu.trace_start"() <{level = 10 : i32, message = "bqd,bkd->bqk"}> : () -> ()
    %cst_15 = arith.constant dense<0.000000e+00> : vector<2x8x8xf32>
    %29 = tpu.matmul %26, %27, %cst_15 {dimension_numbers = #tpu.dot_dimension_numbers<[2], [2], [1], [1], [0, 0, 0, 1, 1, 1], [0], [0]>} : vector<2x8x8xf32>, vector<2x8x8xf32>, vector<2x8x8xf32> -> vector<2x8x8xf32>
    "tpu.trace_stop"() : () -> ()
    %cst_16 = arith.constant dense<0xFF800000> : vector<2x8xf32>
    %30 = vector.multi_reduction <maximumf>, %29, %cst_16 [2] : vector<2x8x8xf32> to vector<2x8xf32>
    %31 = vector.shape_cast %30 : vector<2x8xf32> to vector<2x8x1xf32>
    %32 = vector.broadcast %31 : vector<2x8x1xf32> to vector<2x8x8xf32>
    %33 = arith.subf %29, %32 : vector<2x8x8xf32>
    %34 = math.exp %33 : vector<2x8x8xf32>
    %cst_17 = arith.constant dense<0.000000e+00> : vector<2x8xf32>
    %35 = vector.multi_reduction <add>, %34, %cst_17 [2] : vector<2x8x8xf32> to vector<2x8xf32>
    %36 = vector.shape_cast %35 : vector<2x8xf32> to vector<2x8x1xf32>
    %37 = tpu.reciprocal %36 {approx = true} : vector<2x8x1xf32> -> vector<2x8x1xf32>
    %38 = vector.broadcast %37 : vector<2x8x1xf32> to vector<2x8x8xf32>
    %39 = arith.mulf %34, %38 : vector<2x8x8xf32>
    %cst_18 = arith.constant dense<0.000000e+00> : vector<2x8xf32>
    %40 = vector.multi_reduction <add>, %39, %cst_18 [1] : vector<2x8x8xf32> to vector<2x8xf32>
    %41 = vector.shape_cast %40 : vector<2x8xf32> to vector<2x1x8xf32>
    %cst_19 = arith.constant 8.000000e+00 : f32
    %42 = vector.broadcast %cst_19 : f32 to vector<2x1x8xf32>
    %43 = arith.divf %41, %42 : vector<2x1x8xf32>
    "tpu.trace_start"() <{level = 10 : i32, message = "bql,bld->bqd"}> : () -> ()
    %cst_20 = arith.constant dense<0.000000e+00> : vector<2x1x8xf32>
    %44 = tpu.matmul %43, %28, %cst_20 {dimension_numbers = #tpu.dot_dimension_numbers<[2], [1], [1], [2], [0, 0, 0, 1, 1, 2], [0], [0]>} : vector<2x1x8xf32>, vector<2x8x8xf32>, vector<2x1x8xf32> -> vector<2x1x8xf32>
    "tpu.trace_stop"() : () -> ()
    %45 = vector.shape_cast %44 : vector<2x1x8xf32> to vector<2x8xf32>
    %46 = vector.extract_strided_slice %3 {offsets = [0, 0, 0], sizes = [1, 8, 32], strides = [1, 1, 1]} : vector<4x8x32xf32> to vector<1x8x32xf32>
    %47 = vector.shape_cast %46 : vector<1x8x32xf32> to vector<8x32xf32>
    %cst_21 = arith.constant dense<0.000000e+00> : vector<2x32xf32>
    %48 = tpu.matmul %45, %47, %cst_21 {dimension_numbers = #tpu.dot_dimension_numbers<[1], [0], [0], [1], [0, 0, 1, 1], [], []>} : vector<2x8xf32>, vector<8x32xf32>, vector<2x32xf32> -> vector<2x32xf32>
    %49 = arith.addf %5, %48 : vector<2x32xf32>
    %50 = vector.extract_strided_slice %1 {offsets = [1, 0, 0], sizes = [1, 8, 32], strides = [1, 1, 1]} : vector<12x8x32xbf16> to vector<1x8x32xbf16>
    %51 = vector.shape_cast %50 : vector<1x8x32xbf16> to vector<8x32xbf16>
    %cst_22 = arith.constant dense<0.000000e+00> : vector<16x8xf32>
    %52 = tpu.matmul %0, %51, %cst_22 {dimension_numbers = #tpu.dot_dimension_numbers<[1], [1], [0], [0], [0, 0, 1, 0], [], []>} : vector<16x32xbf16>, vector<8x32xbf16>, vector<16x8xf32> -> vector<16x8xf32>
    %53 = vector.extract_strided_slice %2 {offsets = [1, 0], sizes = [1, 8], strides = [1, 1]} : vector<12x8xf32> to vector<1x8xf32>
    %54 = vector.broadcast %53 : vector<1x8xf32> to vector<16x8xf32>
    %55 = arith.addf %52, %54 : vector<16x8xf32>
    %cst_23 = arith.constant 0.353553385 : f32
    %56 = vector.broadcast %cst_23 : f32 to vector<16x8xf32>
    %57 = arith.mulf %55, %56 : vector<16x8xf32>
    %58 = vector.extract_strided_slice %1 {offsets = [5, 0, 0], sizes = [1, 8, 32], strides = [1, 1, 1]} : vector<12x8x32xbf16> to vector<1x8x32xbf16>
    %59 = vector.shape_cast %58 : vector<1x8x32xbf16> to vector<8x32xbf16>
    %cst_24 = arith.constant dense<0.000000e+00> : vector<16x8xf32>
    %60 = tpu.matmul %0, %59, %cst_24 {dimension_numbers = #tpu.dot_dimension_numbers<[1], [1], [0], [0], [0, 0, 1, 0], [], []>} : vector<16x32xbf16>, vector<8x32xbf16>, vector<16x8xf32> -> vector<16x8xf32>
    %61 = vector.extract_strided_slice %2 {offsets = [5, 0], sizes = [1, 8], strides = [1, 1]} : vector<12x8xf32> to vector<1x8xf32>
    %62 = vector.broadcast %61 : vector<1x8xf32> to vector<16x8xf32>
    %63 = arith.addf %60, %62 : vector<16x8xf32>
    %64 = vector.extract_strided_slice %1 {offsets = [9, 0, 0], sizes = [1, 8, 32], strides = [1, 1, 1]} : vector<12x8x32xbf16> to vector<1x8x32xbf16>
    %65 = vector.shape_cast %64 : vector<1x8x32xbf16> to vector<8x32xbf16>
    %cst_25 = arith.constant dense<0.000000e+00> : vector<16x8xf32>
    %66 = tpu.matmul %0, %65, %cst_25 {dimension_numbers = #tpu.dot_dimension_numbers<[1], [1], [0], [0], [0, 0, 1, 0], [], []>} : vector<16x32xbf16>, vector<8x32xbf16>, vector<16x8xf32> -> vector<16x8xf32>
    %67 = vector.extract_strided_slice %2 {offsets = [9, 0], sizes = [1, 8], strides = [1, 1]} : vector<12x8xf32> to vector<1x8xf32>
    %68 = vector.broadcast %67 : vector<1x8xf32> to vector<16x8xf32>
    %69 = arith.addf %66, %68 : vector<16x8xf32>
    %70 = vector.shape_cast %57 : vector<16x8xf32> to vector<2x8x8xf32>
    %71 = vector.shape_cast %63 : vector<16x8xf32> to vector<2x8x8xf32>
    %72 = vector.shape_cast %69 : vector<16x8xf32> to vector<2x8x8xf32>
    "tpu.trace_start"() <{level = 10 : i32, message = "bqd,bkd->bqk"}> : () -> ()
    %cst_26 = arith.constant dense<0.000000e+00> : vector<2x8x8xf32>
    %73 = tpu.matmul %70, %71, %cst_26 {dimension_numbers = #tpu.dot_dimension_numbers<[2], [2], [1], [1], [0, 0, 0, 1, 1, 1], [0], [0]>} : vector<2x8x8xf32>, vector<2x8x8xf32>, vector<2x8x8xf32> -> vector<2x8x8xf32>
    "tpu.trace_stop"() : () -> ()
    %cst_27 = arith.constant dense<0xFF800000> : vector<2x8xf32>
    %74 = vector.multi_reduction <maximumf>, %73, %cst_27 [2] : vector<2x8x8xf32> to vector<2x8xf32>
    %75 = vector.shape_cast %74 : vector<2x8xf32> to vector<2x8x1xf32>
    %76 = vector.broadcast %75 : vector<2x8x1xf32> to vector<2x8x8xf32>
    %77 = arith.subf %73, %76 : vector<2x8x8xf32>
    %78 = math.exp %77 : vector<2x8x8xf32>
    %cst_28 = arith.constant dense<0.000000e+00> : vector<2x8xf32>
    %79 = vector.multi_reduction <add>, %78, %cst_28 [2] : vector<2x8x8xf32> to vector<2x8xf32>
    %80 = vector.shape_cast %79 : vector<2x8xf32> to vector<2x8x1xf32>
    %81 = tpu.reciprocal %80 {approx = true} : vector<2x8x1xf32> -> vector<2x8x1xf32>
    %82 = vector.broadcast %81 : vector<2x8x1xf32> to vector<2x8x8xf32>
    %83 = arith.mulf %78, %82 : vector<2x8x8xf32>
    %cst_29 = arith.constant dense<0.000000e+00> : vector<2x8xf32>
    %84 = vector.multi_reduction <add>, %83, %cst_29 [1] : vector<2x8x8xf32> to vector<2x8xf32>
    %85 = vector.shape_cast %84 : vector<2x8xf32> to vector<2x1x8xf32>
    %cst_30 = arith.constant 8.000000e+00 : f32
    %86 = vector.broadcast %cst_30 : f32 to vector<2x1x8xf32>
    %87 = arith.divf %85, %86 : vector<2x1x8xf32>
    "tpu.trace_start"() <{level = 10 : i32, message = "bql,bld->bqd"}> : () -> ()
    %cst_31 = arith.constant dense<0.000000e+00> : vector<2x1x8xf32>
    %88 = tpu.matmul %87, %72, %cst_31 {dimension_numbers = #tpu.dot_dimension_numbers<[2], [1], [1], [2], [0, 0, 0, 1, 1, 2], [0], [0]>} : vector<2x1x8xf32>, vector<2x8x8xf32>, vector<2x1x8xf32> -> vector<2x1x8xf32>
    "tpu.trace_stop"() : () -> ()
    %89 = vector.shape_cast %88 : vector<2x1x8xf32> to vector<2x8xf32>
    %90 = vector.extract_strided_slice %3 {offsets = [1, 0, 0], sizes = [1, 8, 32], strides = [1, 1, 1]} : vector<4x8x32xf32> to vector<1x8x32xf32>
    %91 = vector.shape_cast %90 : vector<1x8x32xf32> to vector<8x32xf32>
    %cst_32 = arith.constant dense<0.000000e+00> : vector<2x32xf32>
    %92 = tpu.matmul %89, %91, %cst_32 {dimension_numbers = #tpu.dot_dimension_numbers<[1], [0], [0], [1], [0, 0, 1, 1], [], []>} : vector<2x8xf32>, vector<8x32xf32>, vector<2x32xf32> -> vector<2x32xf32>
    %93 = arith.addf %49, %92 : vector<2x32xf32>
    %94 = vector.extract_strided_slice %1 {offsets = [2, 0, 0], sizes = [1, 8, 32], strides = [1, 1, 1]} : vector<12x8x32xbf16> to vector<1x8x32xbf16>
    %95 = vector.shape_cast %94 : vector<1x8x32xbf16> to vector<8x32xbf16>
    %cst_33 = arith.constant dense<0.000000e+00> : vector<16x8xf32>
    %96 = tpu.matmul %0, %95, %cst_33 {dimension_numbers = #tpu.dot_dimension_numbers<[1], [1], [0], [0], [0, 0, 1, 0], [], []>} : vector<16x32xbf16>, vector<8x32xbf16>, vector<16x8xf32> -> vector<16x8xf32>
    %97 = vector.extract_strided_slice %2 {offsets = [2, 0], sizes = [1, 8], strides = [1, 1]} : vector<12x8xf32> to vector<1x8xf32>
    %98 = vector.broadcast %97 : vector<1x8xf32> to vector<16x8xf32>
    %99 = arith.addf %96, %98 : vector<16x8xf32>
    %cst_34 = arith.constant 0.353553385 : f32
    %100 = vector.broadcast %cst_34 : f32 to vector<16x8xf32>
    %101 = arith.mulf %99, %100 : vector<16x8xf32>
    %102 = vector.extract_strided_slice %1 {offsets = [6, 0, 0], sizes = [1, 8, 32], strides = [1, 1, 1]} : vector<12x8x32xbf16> to vector<1x8x32xbf16>
    %103 = vector.shape_cast %102 : vector<1x8x32xbf16> to vector<8x32xbf16>
    %cst_35 = arith.constant dense<0.000000e+00> : vector<16x8xf32>
    %104 = tpu.matmul %0, %103, %cst_35 {dimension_numbers = #tpu.dot_dimension_numbers<[1], [1], [0], [0], [0, 0, 1, 0], [], []>} : vector<16x32xbf16>, vector<8x32xbf16>, vector<16x8xf32> -> vector<16x8xf32>
    %105 = vector.extract_strided_slice %2 {offsets = [6, 0], sizes = [1, 8], strides = [1, 1]} : vector<12x8xf32> to vector<1x8xf32>
    %106 = vector.broadcast %105 : vector<1x8xf32> to vector<16x8xf32>
    %107 = arith.addf %104, %106 : vector<16x8xf32>
    %108 = vector.extract_strided_slice %1 {offsets = [10, 0, 0], sizes = [1, 8, 32], strides = [1, 1, 1]} : vector<12x8x32xbf16> to vector<1x8x32xbf16>
    %109 = vector.shape_cast %108 : vector<1x8x32xbf16> to vector<8x32xbf16>
    %cst_36 = arith.constant dense<0.000000e+00> : vector<16x8xf32>
    %110 = tpu.matmul %0, %109, %cst_36 {dimension_numbers = #tpu.dot_dimension_numbers<[1], [1], [0], [0], [0, 0, 1, 0], [], []>} : vector<16x32xbf16>, vector<8x32xbf16>, vector<16x8xf32> -> vector<16x8xf32>
    %111 = vector.extract_strided_slice %2 {offsets = [10, 0], sizes = [1, 8], strides = [1, 1]} : vector<12x8xf32> to vector<1x8xf32>
    %112 = vector.broadcast %111 : vector<1x8xf32> to vector<16x8xf32>
    %113 = arith.addf %110, %112 : vector<16x8xf32>
    %114 = vector.shape_cast %101 : vector<16x8xf32> to vector<2x8x8xf32>
    %115 = vector.shape_cast %107 : vector<16x8xf32> to vector<2x8x8xf32>
    %116 = vector.shape_cast %113 : vector<16x8xf32> to vector<2x8x8xf32>
    "tpu.trace_start"() <{level = 10 : i32, message = "bqd,bkd->bqk"}> : () -> ()
    %cst_37 = arith.constant dense<0.000000e+00> : vector<2x8x8xf32>
    %117 = tpu.matmul %114, %115, %cst_37 {dimension_numbers = #tpu.dot_dimension_numbers<[2], [2], [1], [1], [0, 0, 0, 1, 1, 1], [0], [0]>} : vector<2x8x8xf32>, vector<2x8x8xf32>, vector<2x8x8xf32> -> vector<2x8x8xf32>
    "tpu.trace_stop"() : () -> ()
    %cst_38 = arith.constant dense<0xFF800000> : vector<2x8xf32>
    %118 = vector.multi_reduction <maximumf>, %117, %cst_38 [2] : vector<2x8x8xf32> to vector<2x8xf32>
    %119 = vector.shape_cast %118 : vector<2x8xf32> to vector<2x8x1xf32>
    %120 = vector.broadcast %119 : vector<2x8x1xf32> to vector<2x8x8xf32>
    %121 = arith.subf %117, %120 : vector<2x8x8xf32>
    %122 = math.exp %121 : vector<2x8x8xf32>
    %cst_39 = arith.constant dense<0.000000e+00> : vector<2x8xf32>
    %123 = vector.multi_reduction <add>, %122, %cst_39 [2] : vector<2x8x8xf32> to vector<2x8xf32>
    %124 = vector.shape_cast %123 : vector<2x8xf32> to vector<2x8x1xf32>
    %125 = tpu.reciprocal %124 {approx = true} : vector<2x8x1xf32> -> vector<2x8x1xf32>
    %126 = vector.broadcast %125 : vector<2x8x1xf32> to vector<2x8x8xf32>
    %127 = arith.mulf %122, %126 : vector<2x8x8xf32>
    %cst_40 = arith.constant dense<0.000000e+00> : vector<2x8xf32>
    %128 = vector.multi_reduction <add>, %127, %cst_40 [1] : vector<2x8x8xf32> to vector<2x8xf32>
    %129 = vector.shape_cast %128 : vector<2x8xf32> to vector<2x1x8xf32>
    %cst_41 = arith.constant 8.000000e+00 : f32
    %130 = vector.broadcast %cst_41 : f32 to vector<2x1x8xf32>
    %131 = arith.divf %129, %130 : vector<2x1x8xf32>
    "tpu.trace_start"() <{level = 10 : i32, message = "bql,bld->bqd"}> : () -> ()
    %cst_42 = arith.constant dense<0.000000e+00> : vector<2x1x8xf32>
    %132 = tpu.matmul %131, %116, %cst_42 {dimension_numbers = #tpu.dot_dimension_numbers<[2], [1], [1], [2], [0, 0, 0, 1, 1, 2], [0], [0]>} : vector<2x1x8xf32>, vector<2x8x8xf32>, vector<2x1x8xf32> -> vector<2x1x8xf32>
    "tpu.trace_stop"() : () -> ()
    %133 = vector.shape_cast %132 : vector<2x1x8xf32> to vector<2x8xf32>
    %134 = vector.extract_strided_slice %3 {offsets = [2, 0, 0], sizes = [1, 8, 32], strides = [1, 1, 1]} : vector<4x8x32xf32> to vector<1x8x32xf32>
    %135 = vector.shape_cast %134 : vector<1x8x32xf32> to vector<8x32xf32>
    %cst_43 = arith.constant dense<0.000000e+00> : vector<2x32xf32>
    %136 = tpu.matmul %133, %135, %cst_43 {dimension_numbers = #tpu.dot_dimension_numbers<[1], [0], [0], [1], [0, 0, 1, 1], [], []>} : vector<2x8xf32>, vector<8x32xf32>, vector<2x32xf32> -> vector<2x32xf32>
    %137 = arith.addf %93, %136 : vector<2x32xf32>
    %138 = vector.extract_strided_slice %1 {offsets = [3, 0, 0], sizes = [1, 8, 32], strides = [1, 1, 1]} : vector<12x8x32xbf16> to vector<1x8x32xbf16>
    %139 = vector.shape_cast %138 : vector<1x8x32xbf16> to vector<8x32xbf16>
    %cst_44 = arith.constant dense<0.000000e+00> : vector<16x8xf32>
    %140 = tpu.matmul %0, %139, %cst_44 {dimension_numbers = #tpu.dot_dimension_numbers<[1], [1], [0], [0], [0, 0, 1, 0], [], []>} : vector<16x32xbf16>, vector<8x32xbf16>, vector<16x8xf32> -> vector<16x8xf32>
    %141 = vector.extract_strided_slice %2 {offsets = [3, 0], sizes = [1, 8], strides = [1, 1]} : vector<12x8xf32> to vector<1x8xf32>
    %142 = vector.broadcast %141 : vector<1x8xf32> to vector<16x8xf32>
    %143 = arith.addf %140, %142 : vector<16x8xf32>
    %cst_45 = arith.constant 0.353553385 : f32
    %144 = vector.broadcast %cst_45 : f32 to vector<16x8xf32>
    %145 = arith.mulf %143, %144 : vector<16x8xf32>
    %146 = vector.extract_strided_slice %1 {offsets = [7, 0, 0], sizes = [1, 8, 32], strides = [1, 1, 1]} : vector<12x8x32xbf16> to vector<1x8x32xbf16>
    %147 = vector.shape_cast %146 : vector<1x8x32xbf16> to vector<8x32xbf16>
    %cst_46 = arith.constant dense<0.000000e+00> : vector<16x8xf32>
    %148 = tpu.matmul %0, %147, %cst_46 {dimension_numbers = #tpu.dot_dimension_numbers<[1], [1], [0], [0], [0, 0, 1, 0], [], []>} : vector<16x32xbf16>, vector<8x32xbf16>, vector<16x8xf32> -> vector<16x8xf32>
    %149 = vector.extract_strided_slice %2 {offsets = [7, 0], sizes = [1, 8], strides = [1, 1]} : vector<12x8xf32> to vector<1x8xf32>
    %150 = vector.broadcast %149 : vector<1x8xf32> to vector<16x8xf32>
    %151 = arith.addf %148, %150 : vector<16x8xf32>
    %152 = vector.extract_strided_slice %1 {offsets = [11, 0, 0], sizes = [1, 8, 32], strides = [1, 1, 1]} : vector<12x8x32xbf16> to vector<1x8x32xbf16>
    %153 = vector.shape_cast %152 : vector<1x8x32xbf16> to vector<8x32xbf16>
    %cst_47 = arith.constant dense<0.000000e+00> : vector<16x8xf32>
    %154 = tpu.matmul %0, %153, %cst_47 {dimension_numbers = #tpu.dot_dimension_numbers<[1], [1], [0], [0], [0, 0, 1, 0], [], []>} : vector<16x32xbf16>, vector<8x32xbf16>, vector<16x8xf32> -> vector<16x8xf32>
    %155 = vector.extract_strided_slice %2 {offsets = [11, 0], sizes = [1, 8], strides = [1, 1]} : vector<12x8xf32> to vector<1x8xf32>
    %156 = vector.broadcast %155 : vector<1x8xf32> to vector<16x8xf32>
    %157 = arith.addf %154, %156 : vector<16x8xf32>
    %158 = vector.shape_cast %145 : vector<16x8xf32> to vector<2x8x8xf32>
    %159 = vector.shape_cast %151 : vector<16x8xf32> to vector<2x8x8xf32>
    %160 = vector.shape_cast %157 : vector<16x8xf32> to vector<2x8x8xf32>
    "tpu.trace_start"() <{level = 10 : i32, message = "bqd,bkd->bqk"}> : () -> ()
    %cst_48 = arith.constant dense<0.000000e+00> : vector<2x8x8xf32>
    %161 = tpu.matmul %158, %159, %cst_48 {dimension_numbers = #tpu.dot_dimension_numbers<[2], [2], [1], [1], [0, 0, 0, 1, 1, 1], [0], [0]>} : vector<2x8x8xf32>, vector<2x8x8xf32>, vector<2x8x8xf32> -> vector<2x8x8xf32>
    "tpu.trace_stop"() : () -> ()
    %cst_49 = arith.constant dense<0xFF800000> : vector<2x8xf32>
    %162 = vector.multi_reduction <maximumf>, %161, %cst_49 [2] : vector<2x8x8xf32> to vector<2x8xf32>
    %163 = vector.shape_cast %162 : vector<2x8xf32> to vector<2x8x1xf32>
    %164 = vector.broadcast %163 : vector<2x8x1xf32> to vector<2x8x8xf32>
    %165 = arith.subf %161, %164 : vector<2x8x8xf32>
    %166 = math.exp %165 : vector<2x8x8xf32>
    %cst_50 = arith.constant dense<0.000000e+00> : vector<2x8xf32>
    %167 = vector.multi_reduction <add>, %166, %cst_50 [2] : vector<2x8x8xf32> to vector<2x8xf32>
    %168 = vector.shape_cast %167 : vector<2x8xf32> to vector<2x8x1xf32>
    %169 = tpu.reciprocal %168 {approx = true} : vector<2x8x1xf32> -> vector<2x8x1xf32>
    %170 = vector.broadcast %169 : vector<2x8x1xf32> to vector<2x8x8xf32>
    %171 = arith.mulf %166, %170 : vector<2x8x8xf32>
    %cst_51 = arith.constant dense<0.000000e+00> : vector<2x8xf32>
    %172 = vector.multi_reduction <add>, %171, %cst_51 [1] : vector<2x8x8xf32> to vector<2x8xf32>
    %173 = vector.shape_cast %172 : vector<2x8xf32> to vector<2x1x8xf32>
    %cst_52 = arith.constant 8.000000e+00 : f32
    %174 = vector.broadcast %cst_52 : f32 to vector<2x1x8xf32>
    %175 = arith.divf %173, %174 : vector<2x1x8xf32>
    "tpu.trace_start"() <{level = 10 : i32, message = "bql,bld->bqd"}> : () -> ()
    %cst_53 = arith.constant dense<0.000000e+00> : vector<2x1x8xf32>
    %176 = tpu.matmul %175, %160, %cst_53 {dimension_numbers = #tpu.dot_dimension_numbers<[2], [1], [1], [2], [0, 0, 0, 1, 1, 2], [0], [0]>} : vector<2x1x8xf32>, vector<2x8x8xf32>, vector<2x1x8xf32> -> vector<2x1x8xf32>
    "tpu.trace_stop"() : () -> ()
    %177 = vector.shape_cast %176 : vector<2x1x8xf32> to vector<2x8xf32>
    %178 = vector.extract_strided_slice %3 {offsets = [3, 0, 0], sizes = [1, 8, 32], strides = [1, 1, 1]} : vector<4x8x32xf32> to vector<1x8x32xf32>
    %179 = vector.shape_cast %178 : vector<1x8x32xf32> to vector<8x32xf32>
    %cst_54 = arith.constant dense<0.000000e+00> : vector<2x32xf32>
    %180 = tpu.matmul %177, %179, %cst_54 {dimension_numbers = #tpu.dot_dimension_numbers<[1], [0], [0], [1], [0, 0, 1, 1], [], []>} : vector<2x8xf32>, vector<8x32xf32>, vector<2x32xf32> -> vector<2x32xf32>
    %181 = arith.addf %137, %180 : vector<2x32xf32>
    %182 = vector.broadcast %4 : vector<1x32xf32> to vector<2x32xf32>
    %183 = arith.addf %181, %182 : vector<2x32xf32>
    %c0_55 = arith.constant 0 : index
    %c0_56 = arith.constant 0 : index
    %c0_57 = arith.constant 0 : index
    %184 = vector.load %arg6[%c0_55, %c0_56, %c0_57] : memref<1x2x32xf32, #tpu.memory_space<vmem>>, vector<1x2x32xf32>
    %185 = vector.shape_cast %184 : vector<1x2x32xf32> to vector<2x32xf32>
    %186 = vector.shape_cast %183 : vector<2x32xf32> to vector<1x2x32xf32>
    tpu.vector_store %arg6[%c0_55, %c0_56, %c0_57], %186 {strides = array<i32>} : memref<1x2x32xf32, #tpu.memory_space<vmem>>, vector<1x2x32xf32>,
    return
  }
  func.func @transform_0(%arg0: i32) -> (i32, i32) {
    %c0_i32 = arith.constant 0 : i32
    %c0_i32_0 = arith.constant 0 : i32
    return %arg0, %c0_i32 : i32, i32
  }
  func.func @transform_1(%arg0: i32) -> (i32, i32, i32) {
    %c0_i32 = arith.constant 0 : i32
    %c0_i32_0 = arith.constant 0 : i32
    %c0_i32_1 = arith.constant 0 : i32
    %c0_i32_2 = arith.constant 0 : i32
    return %c0_i32, %c0_i32_0, %c0_i32_1 : i32, i32, i32
  }
  func.func @transform_2(%arg0: i32) -> (i32, i32) {
    %c0_i32 = arith.constant 0 : i32
    %c0_i32_0 = arith.constant 0 : i32
    %c0_i32_1 = arith.constant 0 : i32
    return %c0_i32, %c0_i32_0 : i32, i32
  }
  func.func @transform_3(%arg0: i32) -> (i32, i32, i32) {
    %c0_i32 = arith.constant 0 : i32
    %c0_i32_0 = arith.constant 0 : i32
    %c0_i32_1 = arith.constant 0 : i32
    %c0_i32_2 = arith.constant 0 : i32
    return %c0_i32, %c0_i32_0, %c0_i32_1 : i32, i32, i32
  }
  func.func @transform_4(%arg0: i32) -> (i32, i32) {
    %c0_i32 = arith.constant 0 : i32
    %c0_i32_0 = arith.constant 0 : i32
    %c0_i32_1 = arith.constant 0 : i32
    return %c0_i32, %c0_i32_0 : i32, i32
  }
  func.func @transform_5(%arg0: i32) -> (i32, i32, i32) {
    %c0_i32 = arith.constant 0 : i32
    %c0_i32_0 = arith.constant 0 : i32
    %c0_i32_1 = arith.constant 0 : i32
    return %arg0, %c0_i32, %c0_i32_0 : i32, i32, i32
  }
}

</mosaic_0001>

<llo_original>
// kernel: tpu_custom_call.1
$region0: #{tpu_custom_call.1}
  #allocation0 [shape = 'u32[]', space=smem, size = 0x4, offset = 0x4, fixed_abs, tag = 'smem constant byte address 0x4 - core index']
  #allocation1 [shape = 'u32[144,128]{1,0:T(1,128)}', space=vmem, size = 0x12000, scoped, tag = 'internal scratch']
  %s0 = inlined_call_operand.vmem [shape: bf16[32,32], index: 0, kind: input, shape index: {}]
  %s1 = inlined_call_operand.hbm [shape: bf16[12,8,32], index: 1, kind: input, shape index: {}]
  %s2 = inlined_call_operand.vmem [shape: f32[12,8], index: 2, kind: input, shape index: {}]
  %s3 = inlined_call_operand.hbm [shape: f32[4,8,32], index: 3, kind: input, shape index: {}]
  %s4 = inlined_call_operand.vmem [shape: f32[1,32], index: 4, kind: input, shape index: {}]
  %s5 = inlined_call_operand.hbm [shape: f32[2,2,32], index: 5, kind: output, shape index: {}]
  %s6 = sld [smem:[#allocation0]]
  $region61: #{tpu_custom_call.1} parent=0
    _
  %s8 = ssub.s32 1, %s6
  %s9 = scalar_select 0, %s8, %s6
  $region1: #{tpu_custom_call.1} parent=0
    #allocation2 [shape = 'u8[24576]{0}', space=vmem, size = 0x6000, scoped, tag = 'input window, operand 1, single buffered']
    #allocation3 [shape = 's32[2]{0}', space=sflag, size = 0x8, scoped, tag = 'scoped memory for tpu_custom_call.1']
    #allocation4 [shape = 's32[2]{0}', space=sflag, size = 0x8, scoped, tag = 'scoped memory for tpu_custom_call.1']
    #allocation5 [shape = 'u8[16384]{0}', space=vmem, size = 0x4000, scoped, tag = 'input window, operand 3, single buffered']
    #allocation6 [shape = 's32[1]{0}', space=sflag, size = 0x4, scoped, tag = 'scoped memory for tpu_custom_call.1']
    #allocation7 [shape = 'u8[2048]{0}', space=vmem, size = 0x800, scoped, tag = 'output window, operand 0']
    %10 = vsyncpa [#allocation3], 0
    %11 = vsyncpa [#allocation6], 0
    %12 = vsyncpa [#allocation4], 0
    %s13 = scalar_lea.sflag [#allocation4], 1
    %14 = vsyncpa %s13, 0
    loop: start=0, step=1, limit=4
    $region2: #{tpu_custom_call.1} parent=1 // loop_pre_header
      _
    $region3: #{tpu_custom_call.1} parent=1 // loop_header
      %s16 = sphi 0, %s20
      %p17 = scmp.ge.s32.totalorder %s16, 4
      %s26 = sphi 0, %s28
      %s29 = sphi 0, %s26
      %s30 = sphi 0, %s29
      %s46 = sphi 0, %s30
      %s50 = sphi 0, %s50
      %s52 = sphi 0, %s50
      %s53 = sphi 0, %s52
      %s67 = sphi 0, %s53
      %s71 = sphi 0, %s71
      %s73 = sphi 0, %s71
      %s74 = sphi 0, %s73
      %s88 = sphi 0, %s74
      %s92 = sphi 0, %s92
      %s94 = sphi 0, %s92
      %s95 = sphi 0, %s94
      %s109 = sphi 0, %s95
      %s113 = sphi 0, %s113
      %s115 = sphi 0, %s113
      %s116 = sphi 0, %s115
      %s130 = sphi 0, %s116
      %s136 = sphi 0, %s138
      %s139 = sphi 0, %s136
      %s140 = sphi 0, %s139
      %s156 = sphi 0, %s140
    $region4: #{tpu_custom_call.1} parent=1 // loop_header_branch
      %19 = sbr.rel (%p17) target = $region8
    $region5: #{tpu_custom_call.1} parent=1 // loop_body
      %s21 = ssub.s32 %s16, 1
      %s22 = ssub.s32 %s16, 2
      %s23 = sadd.s32 %s16, 1
      %s24 = ssub.s32 %s16, %s23
      %p25 = scmp.eq.s32.totalorder %s24, 0
      %s27 = sadd.s32 %s26, 1
      %s28 = scalar_select %p25, %s26, %s27
      %p31 = pneg %p25
      %p32 = scmp.eq.s32.totalorder %s16, 1
      %p33 = por %p31, %p32
      %p34 = scmp.ne.s32.totalorder %s26, %s29
      %p35 = scmp.eq.s32.totalorder %s16, 0
      %p36 = por %p34, %p35
      %p37 = scmp.ne.s32.totalorder %s26, %s29
      %p38 = scmp.eq.s32.totalorder %s21, 1
      %p39 = por %p37, %p38
      %p40 = scmp.ne.s32.totalorder %s29, %s30
      %p41 = scmp.eq.s32.totalorder %s21, 0
      %p42 = por %p40, %p41
      %p43 = scmp.ne.s32.totalorder %s29, %s30
      %p44 = scmp.eq.s32.totalorder %s22, 1
      %p45 = por %p43, %p44
      %p47 = scmp.ne.s32.totalorder %s30, %s46
      %p48 = scmp.eq.s32.totalorder %s22, 0
      %p49 = por %p47, %p48
      %s51 = sadd.s32 %s50, 1
      %p54 = scmp.eq.s32.totalorder %s16, 1
      %p55 = scmp.ne.s32.totalorder %s50, %s52
      %p56 = scmp.eq.s32.totalorder %s16, 0
      %p57 = por %p55, %p56
      %p58 = scmp.ne.s32.totalorder %s50, %s52
      %p59 = scmp.eq.s32.totalorder %s21, 1
      %p60 = por %p58, %p59
      %p61 = scmp.ne.s32.totalorder %s52, %s53
      %p62 = scmp.eq.s32.totalorder %s21, 0
      %p63 = por %p61, %p62
      %p64 = scmp.ne.s32.totalorder %s52, %s53
      %p65 = scmp.eq.s32.totalorder %s22, 1
      %p66 = por %p64, %p65
      %p68 = scmp.ne.s32.totalorder %s53, %s67
      %p69 = scmp.eq.s32.totalorder %s22, 0
      %p70 = por %p68, %p69
      %s72 = sadd.s32 %s71, 1
      %p75 = scmp.eq.s32.totalorder %s16, 1
      %p76 = scmp.ne.s32.totalorder %s71, %s73
      %p77 = scmp.eq.s32.totalorder %s16, 0
      %p78 = por %p76, %p77
      %p79 = scmp.ne.s32.totalorder %s71, %s73
      %p80 = scmp.eq.s32.totalorder %s21, 1
      %p81 = por %p79, %p80
      %p82 = scmp.ne.s32.totalorder %s73, %s74
      %p83 = scmp.eq.s32.totalorder %s21, 0
      %p84 = por %p82, %p83
      %p85 = scmp.ne.s32.totalorder %s73, %s74
      %p86 = scmp.eq.s32.totalorder %s22, 1
      %p87 = por %p85, %p86
      %p89 = scmp.ne.s32.totalorder %s74, %s88
      %p90 = scmp.eq.s32.totalorder %s22, 0
      %p91 = por %p89, %p90
      %s93 = sadd.s32 %s92, 1
      %p96 = scmp.eq.s32.totalorder %s16, 1
      %p97 = scmp.ne.s32.totalorder %s92, %s94
      %p98 = scmp.eq.s32.totalorder %s16, 0
      %p99 = por %p97, %p98
      %p100 = scmp.ne.s32.totalorder %s92, %s94
      %p101 = scmp.eq.s32.totalorder %s21, 1
      %p102 = por %p100, %p101
      %p103 = scmp.ne.s32.totalorder %s94, %s95
      %p104 = scmp.eq.s32.totalorder %s21, 0
      %p105 = por %p103, %p104
      %p106 = scmp.ne.s32.totalorder %s94, %s95
      %p107 = scmp.eq.s32.totalorder %s22, 1
      %p108 = por %p106, %p107
      %p110 = scmp.ne.s32.totalorder %s95, %s109
      %p111 = scmp.eq.s32.totalorder %s22, 0
      %p112 = por %p110, %p111
      %s114 = sadd.s32 %s113, 1
      %p117 = scmp.eq.s32.totalorder %s16, 1
      %p118 = scmp.ne.s32.totalorder %s113, %s115
      %p119 = scmp.eq.s32.totalorder %s16, 0
      %p120 = por %p118, %p119
      %p121 = scmp.ne.s32.totalorder %s113, %s115
      %p122 = scmp.eq.s32.totalorder %s21, 1
      %p123 = por %p121, %p122
      %p124 = scmp.ne.s32.totalorder %s115, %s116
      %p125 = scmp.eq.s32.totalorder %s21, 0
      %p126 = por %p124, %p125
      %p127 = scmp.ne.s32.totalorder %s115, %s116
      %p128 = scmp.eq.s32.totalorder %s22, 1
      %p129 = por %p127, %p128
      %p131 = scmp.ne.s32.totalorder %s116, %s130
      %p132 = scmp.eq.s32.totalorder %s22, 0
      %p133 = por %p131, %p132
      %s134 = ssub.s32 %s16, %s23
      %p135 = scmp.eq.s32.totalorder %s134, 0
      %s137 = sadd.s32 %s136, 1
      %s138 = scalar_select %p135, %s136, %s137
      %p141 = pneg %p135
      %p142 = scmp.eq.s32.totalorder %s16, 1
      %p143 = por %p141, %p142
      %p144 = scmp.ne.s32.totalorder %s136, %s139
      %p145 = scmp.eq.s32.totalorder %s16, 0
      %p146 = por %p144, %p145
      %p147 = scmp.ne.s32.totalorder %s136, %s139
      %p148 = scmp.eq.s32.totalorder %s21, 1
      %p149 = por %p147, %p148
      %p150 = scmp.ne.s32.totalorder %s139, %s140
      %p151 = scmp.eq.s32.totalorder %s21, 0
      %p152 = por %p150, %p151
      %p153 = scmp.ne.s32.totalorder %s139, %s140
      %p154 = scmp.eq.s32.totalorder %s22, 1
      %p155 = por %p153, %p154
      %p157 = scmp.ne.s32.totalorder %s140, %s156
      %p158 = scmp.eq.s32.totalorder %s22, 0
      %p159 = por %p157, %p158
      %p160 = scmp.le.s32.totalorder 1, %s16
      %p161 = scmp.lt.s32.totalorder %s16, 3
      %p162 = pnand %p160, %p161
      %p163 = pneg %p162
      // Predicated region
      $region9: #{tpu_custom_call.1} parent=5 // pred_check
        _
      $region10: #{tpu_custom_call.1} parent=5 // pred_check_branch
        %165 = sbr.rel (%p162) target = $region12
      $region11: #{tpu_custom_call.1} parent=5 // pred_region
        %s166 = ssub.s32 %s16, 1
        // Predicated region
        $region13: #{tpu_custom_call.1} parent=11 // pred_check
          %p167 = pneg %p63
        $region14: #{tpu_custom_call.1} parent=11 // pred_check_branch
          %169 = sbr.rel (%p167) target = $region16
        $region15: #{tpu_custom_call.1} parent=11 // pred_region
          %s171 = ssub.s32 768, 768
          %172 = vsyncadd [#allocation3], %s171
          %s173 = sshll.u32 [#allocation2], 4
          %s174 = int_to_ptr.vmem [resolvable:$true] %s173
          %179 = dma.hbm_to_vmem [thread:$0]  %s1, 768, %s174, [#allocation3], 64, 64, 4
        $region16: #{tpu_custom_call.1} parent=11 // pred_fallthru
          _
        // Predicated region
        $region17: #{tpu_custom_call.1} parent=11 // pred_check
          %p180 = pneg %p84
        $region18: #{tpu_custom_call.1} parent=11 // pred_check_branch
          %182 = sbr.rel (%p180) target = $region20
        $region19: #{tpu_custom_call.1} parent=11 // pred_region
          _
        $region20: #{tpu_custom_call.1} parent=11 // pred_fallthru
          _
        // Predicated region
        $region21: #{tpu_custom_call.1} parent=11 // pred_check
          %p183 = pneg %p105
        $region22: #{tpu_custom_call.1} parent=11 // pred_check_branch
          %185 = sbr.rel (%p183) target = $region24
        $region23: #{tpu_custom_call.1} parent=11 // pred_region
          %s187 = ssub.s32 512, 512
          %188 = vsyncadd [#allocation6], %s187
          %s189 = sshll.u32 [#allocation5], 4
          %s190 = int_to_ptr.vmem [resolvable:$true] %s189
          %195 = dma.hbm_to_vmem [thread:$0]  %s3, 512, %s190, [#allocation6], 128, 128, 8
        $region24: #{tpu_custom_call.1} parent=11 // pred_fallthru
          _
        // Predicated region
        $region25: #{tpu_custom_call.1} parent=11 // pred_check
          %p196 = pneg %p126
        $region26: #{tpu_custom_call.1} parent=11 // pred_check_branch
          %198 = sbr.rel (%p196) target = $region28
        $region27: #{tpu_custom_call.1} parent=11 // pred_region
          _
        $region28: #{tpu_custom_call.1} parent=11 // pred_fallthru
          _
      $region12: #{tpu_custom_call.1} parent=5 // pred_fallthru
        _
      %p199 = scmp.lt.s32.totalorder %s16, 2
      // Predicated region
      $region29: #{tpu_custom_call.1} parent=5 // pred_check
        %p200 = pneg %p199
      $region30: #{tpu_custom_call.1} parent=5 // pred_check_branch
        %202 = sbr.rel (%p200) target = $region32
      $region31: #{tpu_custom_call.1} parent=5 // pred_region
        // Predicated region
        $region33: #{tpu_custom_call.1} parent=31 // pred_check
          %p203 = pneg %p36
        $region34: #{tpu_custom_call.1} parent=31 // pred_check_branch
          %205 = sbr.rel (%p203) target = $region36
        $region35: #{tpu_custom_call.1} parent=31 // pred_region
          %s206 = smul.u32 2, %s16
          %p207 = scmp.lt.s32.totalorder %s206, 3
          %s208 = scalar_select %p207, %s206, 3
          %s209 = smul.addr %s208, 4
          %s210 = scalar_lea.vmem %s0, %s209
          %s211 = smul.u32 2, %s16
        $region36: #{tpu_custom_call.1} parent=31 // pred_fallthru
          _
      $region32: #{tpu_custom_call.1} parent=5 // pred_fallthru
        _
      %p212 = scmp.le.s32.totalorder 1, %s16
      %p213 = scmp.lt.s32.totalorder %s16, 3
      %p214 = pnand %p212, %p213
      %p215 = pneg %p214
      // Predicated region
      $region37: #{tpu_custom_call.1} parent=5 // pred_check
        _
      $region38: #{tpu_custom_call.1} parent=5 // pred_check_branch
        %217 = sbr.rel (%p214) target = $region40
      $region39: #{tpu_custom_call.1} parent=5 // pred_region
        %s218 = ssub.s32 %s16, 1
        // Predicated region
        $region41: #{tpu_custom_call.1} parent=39 // pred_check
          %p219 = pneg %p63
        $region42: #{tpu_custom_call.1} parent=39 // pred_check_branch
          %221 = sbr.rel (%p219) target = $region44
        $region43: #{tpu_custom_call.1} parent=39 // pred_region
          %222 = dma.done [#allocation3], 768
        $region44: #{tpu_custom_call.1} parent=39 // pred_fallthru
          _
        // Predicated region
        $region45: #{tpu_custom_call.1} parent=39 // pred_check
          %p223 = pneg %p105
        $region46: #{tpu_custom_call.1} parent=39 // pred_check_branch
          %225 = sbr.rel (%p223) target = $region48
        $region47: #{tpu_custom_call.1} parent=39 // pred_region
          %226 = dma.done [#allocation6], 512
        $region48: #{tpu_custom_call.1} parent=39 // pred_fallthru
          _
        %s227 = smul.u32 2, %s21
        %p228 = scmp.lt.s32.totalorder %s227, 3
        %s229 = scalar_select %p228, %s227, 3
        %s230 = smul.addr %s229, 4
        %s231 = scalar_lea.vmem %s0, %s230
        %p232 = pneg %p42
        %p233 = pneg %p39
        %p234 = pneg %p63
        %p235 = pneg %p60
        %p236 = pneg %p84
        %p237 = pneg %p81
        %p238 = pneg %p105
        %p239 = pneg %p102
        %p240 = pneg %p126
        %p241 = pneg %p123
        %p242 = pneg %p152
        %p243 = pneg %p149
        %s244 = sand.u32 %s139, 1
        %s245 = scalar_lea.sflag [#allocation4], %s244
        %s246 = sand.u32 %s139, 1
        %s247 = smul.addr %s246, 2
        %s248 = scalar_lea.vmem [#allocation7], %s247
        %s249 = smul.u32 2, %s21
        %p250 = scmp.lt.s32.totalorder %s249, 3
        %s251 = scalar_select %p250, %s249, 3
        %s252 = smul.addr %s251, 4
        %s253 = scalar_lea.vmem %s0, %s252
        %s254 = smul.u32 2, %s21
        %v256 = vld [vmem:[%s253] sm:$0xf]
        %v257 = vld [vmem:[%s253 + $0x4] sm:$0xf]
        %v258 = vld [vmem:[#allocation2] sm:$0xf]
        %v259 = vld [vmem:[#allocation2 + $0x4] sm:$0xf]
        %v260 = vld [vmem:[#allocation2 + $0x8] sm:$0xf]
        %v261 = vld [vmem:[#allocation2 + $0xc] sm:$0xf]
        %v262 = vld [vmem:[#allocation2 + $0x10] sm:$0xf]
        %v263 = vld [vmem:[#allocation2 + $0x14] sm:$0xf]
        %v264 = vld [vmem:[#allocation2 + $0x18] sm:$0xf]
        %v265 = vld [vmem:[#allocation2 + $0x1c] sm:$0xf]
        %v266 = vld [vmem:[#allocation2 + $0x20] sm:$0xf]
        %v267 = vld [vmem:[#allocation2 + $0x24] sm:$0xf]
        %v268 = vld [vmem:[#allocation2 + $0x28] sm:$0xf]
        %v269 = vld [vmem:[#allocation2 + $0x2c] sm:$0xf]
        %v270 = vld [vmem:[%s2] sm:$0xff]
        %v271 = vld [vmem:[%s2 + $0x8] sm:$0xf]
        %v272 = vld [vmem:[#allocation5] sm:$0xff]
        %v273 = vld [vmem:[#allocation5 + $0x8] sm:$0xff]
        %v274 = vld [vmem:[#allocation5 + $0x10] sm:$0xff]
        %v275 = vld [vmem:[#allocation5 + $0x18] sm:$0xff]
        %v276 = vld [vmem:[%s4] sm:$0x1]
        %v277 = vlaneseq
        %v278 = vshrl.u32 %v277, 7
        %v279 = vsub.s32 0, %v278
        %v280 = vrot.slane %v270, %v279
        %v283 = vunpack.c.l.b16 %v256
        %v284 = vunpack.c.l.b16 %v257
        %v285 = vpack.c.b16 %v284, %v283
        %vm286 = vcmask 261120
        %v288 = vsel %vm286, %v285, 0
        %v291 = vsel %vm286, %v258, 0
        %293 = vmatprep.subr.bf16.mxu0 0
        %294 = vmatpush1.bf16.xpose.msra.mxu0 0
        %295 = vmatprep.subr.bf16.mxu0 0
        %296 = vmatpush1.bf16.xpose.msra.mxu0 0
        %297 = vmatprep.subr.bf16.mxu0 0
        %298 = vmatpush1.bf16.xpose.msra.mxu0 0
        %299 = vmatprep.subr.bf16.mxu0 0
        %300 = vmatpush1.bf16.xpose.msra.mxu0 0
        %301 = vmatprep.subr.bf16.mxu0 0
        %302 = vmatpush1.bf16.xpose.msra.mxu0 0
        %303 = vmatprep.subr.bf16.mxu0 0
        %304 = vmatpush1.bf16.xpose.msra.mxu0 0
        %305 = vmatprep.subr.bf16.mxu0 0
        %306 = vmatpush1.bf16.xpose.msra.mxu0 0
        %307 = vmatprep.subr.bf16.mxu0 0
        %308 = vmatpush1.bf16.xpose.msra.mxu0 %v291
        %309 = vmatprep.subr.bf16.mxu0 0
        %310 = vmatpush2.bf16.xpose.msra.mxu0 0
        %311 = vmatprep.subr.bf16.mxu0 0
        %312 = vmatpush2.bf16.xpose.msra.mxu0 0
        %313 = vmatprep.subr.bf16.mxu0 0
        %314 = vmatpush2.bf16.xpose.msra.mxu0 0
        %315 = vmatprep.subr.bf16.mxu0 0
        %316 = vmatpush2.bf16.xpose.msra.mxu0 0
        %317 = vmatprep.subr.bf16.mxu0 0
        %318 = vmatpush2.bf16.xpose.msra.mxu0 0
        %319 = vmatprep.subr.bf16.mxu0 0
        %320 = vmatpush2.bf16.xpose.msra.mxu0 0
        %321 = vmatprep.subr.bf16.mxu0 0
        %322 = vmatpush2.bf16.xpose.msra.mxu0 0
        %323 = vmatprep.subr.bf16.mxu0 0
        %324 = vmatpush2.bf16.xpose.msra.mxu0 0
        %325 = vmatprep.mubr.bf16.mxu0 0
        %326 = vmatmul.mubr.bf16.gmra.mxu0 %v288
        %v327 = vpop.f32.mrf.mxu0
        %v328 = vadd.f32 %v280, %v327
        %v329 = vpop.f32.mrf.mxu0
        %v330 = vpop.f32.mrf.mxu0
        %v331 = vadd.f32 %v280, %v330
        %v332 = vpop.f32.mrf.mxu0
        %333 = vdwg.mxu0
        %v334 = vmul.f32 %v328, 0.35355338
        %v335 = vmul.f32 %v331, 0.35355338
        %v336 = vlaneseq
        %v337 = vshrl.u32 %v336, 7
        %v338 = vsub.s32 4, %v337
        %v339 = vrot.slane %v270, %v338
        %v341 = vsel %vm286, %v262, 0
        %343 = vmatprep.subr.bf16.mxu0 0
        %344 = vmatpush1.bf16.xpose.msra.mxu0 0
        %345 = vmatprep.subr.bf16.mxu0 0
        %346 = vmatpush1.bf16.xpose.msra.mxu0 0
        %347 = vmatprep.subr.bf16.mxu0 0
        %348 = vmatpush1.bf16.xpose.msra.mxu0 0
        %349 = vmatprep.subr.bf16.mxu0 0
        %350 = vmatpush1.bf16.xpose.msra.mxu0 0
        %351 = vmatprep.subr.bf16.mxu0 0
        %352 = vmatpush1.bf16.xpose.msra.mxu0 0
        %353 = vmatprep.subr.bf16.mxu0 0
        %354 = vmatpush1.bf16.xpose.msra.mxu0 0
        %355 = vmatprep.subr.bf16.mxu0 0
        %356 = vmatpush1.bf16.xpose.msra.mxu0 0
        %357 = vmatprep.subr.bf16.mxu0 0
        %358 = vmatpush1.bf16.xpose.msra.mxu0 %v341
        %359 = vmatprep.subr.bf16.mxu0 0
        %360 = vmatpush2.bf16.xpose.msra.mxu0 0
        %361 = vmatprep.subr.bf16.mxu0 0
        %362 = vmatpush2.bf16.xpose.msra.mxu0 0
        %363 = vmatprep.subr.bf16.mxu0 0
        %364 = vmatpush2.bf16.xpose.msra.mxu0 0
        %365 = vmatprep.subr.bf16.mxu0 0
        %366 = vmatpush2.bf16.xpose.msra.mxu0 0
        %367 = vmatprep.subr.bf16.mxu0 0
        %368 = vmatpush2.bf16.xpose.msra.mxu0 0
        %369 = vmatprep.subr.bf16.mxu0 0
        %370 = vmatpush2.bf16.xpose.msra.mxu0 0
        %371 = vmatprep.subr.bf16.mxu0 0
        %372 = vmatpush2.bf16.xpose.msra.mxu0 0
        %373 = vmatprep.subr.bf16.mxu0 0
        %374 = vmatpush2.bf16.xpose.msra.mxu0 0
        %375 = vmatprep.mubr.bf16.mxu0 0
        %376 = vmatmul.mubr.bf16.gmra.mxu0 %v288
        %v377 = vpop.f32.mrf.mxu0
        %v378 = vadd.f32 %v339, %v377
        %v379 = vpop.f32.mrf.mxu0
        %v380 = vpop.f32.mrf.mxu0
        %v381 = vadd.f32 %v339, %v380
        %v382 = vpop.f32.mrf.mxu0
        %383 = vdwg.mxu0
        %v384 = vlaneseq
        %v385 = vshrl.u32 %v384, 7
        %v386 = vsub.s32 0, %v385
        %v387 = vrot.slane %v271, %v386
        %v389 = vsel %vm286, %v266, 0
        %391 = vmatprep.subr.bf16.mxu0 0
        %392 = vmatpush1.bf16.xpose.msra.mxu0 0
        %393 = vmatprep.subr.bf16.mxu0 0
        %394 = vmatpush1.bf16.xpose.msra.mxu0 0
        %395 = vmatprep.subr.bf16.mxu0 0
        %396 = vmatpush1.bf16.xpose.msra.mxu0 0
        %397 = vmatprep.subr.bf16.mxu0 0
        %398 = vmatpush1.bf16.xpose.msra.mxu0 0
        %399 = vmatprep.subr.bf16.mxu0 0
        %400 = vmatpush1.bf16.xpose.msra.mxu0 0
        %401 = vmatprep.subr.bf16.mxu0 0
        %402 = vmatpush1.bf16.xpose.msra.mxu0 0
        %403 = vmatprep.subr.bf16.mxu0 0
        %404 = vmatpush1.bf16.xpose.msra.mxu0 0
        %405 = vmatprep.subr.bf16.mxu0 0
        %406 = vmatpush1.bf16.xpose.msra.mxu0 %v389
        %407 = vmatprep.subr.bf16.mxu0 0
        %408 = vmatpush2.bf16.xpose.msra.mxu0 0
        %409 = vmatprep.subr.bf16.mxu0 0
        %410 = vmatpush2.bf16.xpose.msra.mxu0 0
        %411 = vmatprep.subr.bf16.mxu0 0
        %412 = vmatpush2.bf16.xpose.msra.mxu0 0
        %413 = vmatprep.subr.bf16.mxu0 0
        %414 = vmatpush2.bf16.xpose.msra.mxu0 0
        %415 = vmatprep.subr.bf16.mxu0 0
        %416 = vmatpush2.bf16.xpose.msra.mxu0 0
        %417 = vmatprep.subr.bf16.mxu0 0
        %418 = vmatpush2.bf16.xpose.msra.mxu0 0
        %419 = vmatprep.subr.bf16.mxu0 0
        %420 = vmatpush2.bf16.xpose.msra.mxu0 0
        %421 = vmatprep.subr.bf16.mxu0 0
        %422 = vmatpush2.bf16.xpose.msra.mxu0 0
        %423 = vmatprep.mubr.bf16.mxu0 0
        %424 = vmatmul.mubr.bf16.gmra.mxu0 %v288
        %v425 = vpop.f32.mrf.mxu0
        %v426 = vadd.f32 %v387, %v425
        %v427 = vpop.f32.mrf.mxu0
        %v428 = vpop.f32.mrf.mxu0
        %v429 = vadd.f32 %v387, %v428
        %v430 = vpop.f32.mrf.mxu0
        %431 = vdwg.mxu0
        %vm432 = vcmask 64512
        %v434 = vsel %vm432, %v334, 0
        %v437 = vsel %vm432, %v378, 0
        %439 = vmatprep.subr.mxu0 0.0
        %440 = vmatpush1.xpose.msra.mxu0 0.0
        %441 = vmatprep.subr.mxu0 0.0
        %442 = vmatpush1.xpose.msra.mxu0 0.0
        %443 = vmatprep.subr.mxu0 0.0
        %444 = vmatpush1.xpose.msra.mxu0 0.0
        %445 = vmatprep.subr.mxu0 0.0
        %446 = vmatpush1.xpose.msra.mxu0 0.0
        %447 = vmatprep.subr.mxu0 0.0
        %448 = vmatpush1.xpose.msra.mxu0 0.0
        %449 = vmatprep.subr.mxu0 0.0
        %450 = vmatpush1.xpose.msra.mxu0 0.0
        %451 = vmatprep.subr.mxu0 0.0
        %452 = vmatpush1.xpose.msra.mxu0 0.0
        %453 = vmatprep.subr.mxu0 0.0
        %454 = vmatpush1.xpose.msra.mxu0 0.0
        %455 = vmatprep.subr.mxu0 0.0
        %456 = vmatpush1.xpose.msra.mxu0 0.0
        %457 = vmatprep.subr.mxu0 0.0
        %458 = vmatpush1.xpose.msra.mxu0 0.0
        %459 = vmatprep.subr.mxu0 0.0
        %460 = vmatpush1.xpose.msra.mxu0 0.0
        %461 = vmatprep.subr.mxu0 0.0
        %462 = vmatpush1.xpose.msra.mxu0 0.0
        %463 = vmatprep.subr.mxu0 0.0
        %464 = vmatpush1.xpose.msra.mxu0 0.0
        %465 = vmatprep.subr.mxu0 0.0
        %466 = vmatpush1.xpose.msra.mxu0 0.0
        %467 = vmatprep.subr.mxu0 0.0
        %468 = vmatpush1.xpose.msra.mxu0 0.0
        %469 = vmatprep.subr.mxu0 0.0
        %470 = vmatpush1.xpose.msra.mxu0 %v437
        %471 = vmatprep.subr.mxu0 0.0
        %472 = vmatpush2.xpose.msra.mxu0 0.0
        %473 = vmatprep.subr.mxu0 0.0
        %474 = vmatpush2.xpose.msra.mxu0 0.0
        %475 = vmatprep.subr.mxu0 0.0
        %476 = vmatpush2.xpose.msra.mxu0 0.0
        %477 = vmatprep.subr.mxu0 0.0
        %478 = vmatpush2.xpose.msra.mxu0 0.0
        %479 = vmatprep.subr.mxu0 0.0
        %480 = vmatpush2.xpose.msra.mxu0 0.0
        %481 = vmatprep.subr.mxu0 0.0
        %482 = vmatpush2.xpose.msra.mxu0 0.0
        %483 = vmatprep.subr.mxu0 0.0
        %484 = vmatpush2.xpose.msra.mxu0 0.0
        %485 = vmatprep.subr.mxu0 0.0
        %486 = vmatpush2.xpose.msra.mxu0 0.0
        %487 = vmatprep.subr.mxu0 0.0
        %488 = vmatpush2.xpose.msra.mxu0 0.0
        %489 = vmatprep.subr.mxu0 0.0
        %490 = vmatpush2.xpose.msra.mxu0 0.0
        %491 = vmatprep.subr.mxu0 0.0
        %492 = vmatpush2.xpose.msra.mxu0 0.0
        %493 = vmatprep.subr.mxu0 0.0
        %494 = vmatpush2.xpose.msra.mxu0 0.0
        %495 = vmatprep.subr.mxu0 0.0
        %496 = vmatpush2.xpose.msra.mxu0 0.0
        %497 = vmatprep.subr.mxu0 0.0
        %498 = vmatpush2.xpose.msra.mxu0 0.0
        %499 = vmatprep.subr.mxu0 0.0
        %500 = vmatpush2.xpose.msra.mxu0 0.0
        %501 = vmatprep.subr.mxu0 0.0
        %502 = vmatpush2.xpose.msra.mxu0 0.0
        %503 = vmatprep.mubr.f32.mxu0 0.0
        %504 = vmatmul.mubr.f32.gmra.mxu0 %v434
        %v505 = vpop.f32.mrf.mxu0
        %v506 = vadd.f32 0.0, %v505
        %v507 = vpop.f32.mrf.mxu0
        %508 = vdwg.mxu0
        %v510 = vsel %vm432, %v335, 0
        %v513 = vsel %vm432, %v381, 0
        %515 = vmatprep.subr.mxu0 0.0
        %516 = vmatpush1.xpose.msra.mxu0 0.0
        %517 = vmatprep.subr.mxu0 0.0
        %518 = vmatpush1.xpose.msra.mxu0 0.0
        %519 = vmatprep.subr.mxu0 0.0
        %520 = vmatpush1.xpose.msra.mxu0 0.0
        %521 = vmatprep.subr.mxu0 0.0
        %522 = vmatpush1.xpose.msra.mxu0 0.0
        %523 = vmatprep.subr.mxu0 0.0
        %524 = vmatpush1.xpose.msra.mxu0 0.0
        %525 = vmatprep.subr.mxu0 0.0
        %526 = vmatpush1.xpose.msra.mxu0 0.0
        %527 = vmatprep.subr.mxu0 0.0
        %528 = vmatpush1.xpose.msra.mxu0 0.0
        %529 = vmatprep.subr.mxu0 0.0
        %530 = vmatpush1.xpose.msra.mxu0 0.0
        %531 = vmatprep.subr.mxu0 0.0
        %532 = vmatpush1.xpose.msra.mxu0 0.0
        %533 = vmatprep.subr.mxu0 0.0
        %534 = vmatpush1.xpose.msra.mxu0 0.0
        %535 = vmatprep.subr.mxu0 0.0
        %536 = vmatpush1.xpose.msra.mxu0 0.0
        %537 = vmatprep.subr.mxu0 0.0
        %538 = vmatpush1.xpose.msra.mxu0 0.0
        %539 = vmatprep.subr.mxu0 0.0
        %540 = vmatpush1.xpose.msra.mxu0 0.0
        %541 = vmatprep.subr.mxu0 0.0
        %542 = vmatpush1.xpose.msra.mxu0 0.0
        %543 = vmatprep.subr.mxu0 0.0
        %544 = vmatpush1.xpose.msra.mxu0 0.0
        %545 = vmatprep.subr.mxu0 0.0
        %546 = vmatpush1.xpose.msra.mxu0 %v513
        %547 = vmatprep.subr.mxu0 0.0
        %548 = vmatpush2.xpose.msra.mxu0 0.0
        %549 = vmatprep.subr.mxu0 0.0
        %550 = vmatpush2.xpose.msra.mxu0 0.0
        %551 = vmatprep.subr.mxu0 0.0
        %552 = vmatpush2.xpose.msra.mxu0 0.0
        %553 = vmatprep.subr.mxu0 0.0
        %554 = vmatpush2.xpose.msra.mxu0 0.0
        %555 = vmatprep.subr.mxu0 0.0
        %556 = vmatpush2.xpose.msra.mxu0 0.0
        %557 = vmatprep.subr.mxu0 0.0
        %558 = vmatpush2.xpose.msra.mxu0 0.0
        %559 = vmatprep.subr.mxu0 0.0
        %560 = vmatpush2.xpose.msra.mxu0 0.0
        %561 = vmatprep.subr.mxu0 0.0
        %562 = vmatpush2.xpose.msra.mxu0 0.0
        %563 = vmatprep.subr.mxu0 0.0
        %564 = vmatpush2.xpose.msra.mxu0 0.0
        %565 = vmatprep.subr.mxu0 0.0
        %566 = vmatpush2.xpose.msra.mxu0 0.0
        %567 = vmatprep.subr.mxu0 0.0
        %568 = vmatpush2.xpose.msra.mxu0 0.0
        %569 = vmatprep.subr.mxu0 0.0
        %570 = vmatpush2.xpose.msra.mxu0 0.0
        %571 = vmatprep.subr.mxu0 0.0
        %572 = vmatpush2.xpose.msra.mxu0 0.0
        %573 = vmatprep.subr.mxu0 0.0
        %574 = vmatpush2.xpose.msra.mxu0 0.0
        %575 = vmatprep.subr.mxu0 0.0
        %576 = vmatpush2.xpose.msra.mxu0 0.0
        %577 = vmatprep.subr.mxu0 0.0
        %578 = vmatpush2.xpose.msra.mxu0 0.0
        %579 = vmatprep.mubr.f32.mxu0 0.0
        %580 = vmatmul.mubr.f32.gmra.mxu0 %v510
        %v581 = vpop.f32.mrf.mxu0
        %v582 = vadd.f32 0.0, %v581
        %v583 = vpop.f32.mrf.mxu0
        %584 = vdwg.mxu0
        %v585 = vsel %vm432, %v506, -inf
        %586 = vmax.xlane.f32.xlu0 %v585
        %v587 = vpop.xlane.xlu0 %586
        %v588 = vsel %vm432, %v582, -inf
        %589 = vmax.xlane.f32.xlu0 %v588
        %v590 = vpop.xlane.xlu0 %589
        %v591 = vsub.f32 %v506, %v587
        %v592 = vsub.f32 %v582, %v590
        %v593 = vmul.f32 %v591, 1.442695
        %v594 = vpow.pop %v593
        %v595 = vmul.f32 %v592, 1.442695
        %v596 = vpow.pop %v595
        %v597 = vsel %vm432, %v594, 0.0
        %598 = vadd.xlane.f32.xlu0 %v597
        %v599 = vpop.xlane.xlu0 %598
        %v600 = vsel %vm432, %v596, 0.0
        %601 = vadd.xlane.f32.xlu0 %v600
        %v602 = vpop.xlane.xlu0 %601
        %v603 = vrcp.pop %v599
        %v604 = vrcp.pop %v602
        %v605 = vmul.f32 %v594, %v603
        %v606 = vmul.f32 %v596, %v604
        %v607 = vsel %vm432, %v605, 0.0
        %v608 = vrot.slane %v607, 4
        %v609 = vadd.f32 %v607, %v608
        %v610 = vrot.slane %v609, 2
        %v611 = vadd.f32 %v609, %v610
        %v612 = vrot.slane %v611, 1
        %v613 = vadd.f32 %v611, %v612
        %v614 = vsel %vm432, %v606, 0.0
        %v615 = vrot.slane %v614, 4
        %v616 = vadd.f32 %v614, %v615
        %v617 = vrot.slane %v616, 2
        %v618 = vadd.f32 %v616, %v617
        %v619 = vrot.slane %v618, 1
        %v620 = vadd.f32 %v618, %v619
        %v621 = vrcp.pop 8.0
        %v622 = vmul.f32 %v613, %v621
        %v623 = vmul.f32 %v620, %v621
        %v625 = vsel %vm432, %v622, 0
        %627 = vmatprep.subr.mxu0 0.0
        %628 = vmatpush1.msra.mxu0 0.0
        %629 = vmatprep.subr.mxu0 0.0
        %630 = vmatpush1.msra.mxu0 0.0
        %631 = vmatprep.subr.mxu0 0.0
        %632 = vmatpush1.msra.mxu0 0.0
        %633 = vmatprep.subr.mxu0 0.0
        %634 = vmatpush1.msra.mxu0 0.0
        %635 = vmatprep.subr.mxu0 0.0
        %636 = vmatpush1.msra.mxu0 0.0
        %637 = vmatprep.subr.mxu0 0.0
        %638 = vmatpush1.msra.mxu0 0.0
        %639 = vmatprep.subr.mxu0 0.0
        %640 = vmatpush1.msra.mxu0 0.0
        %641 = vmatprep.subr.mxu0 0.0
        %642 = vmatpush1.msra.mxu0 0.0
        %643 = vmatprep.subr.mxu0 0.0
        %644 = vmatpush1.msra.mxu0 0.0
        %645 = vmatprep.subr.mxu0 0.0
        %646 = vmatpush1.msra.mxu0 0.0
        %647 = vmatprep.subr.mxu0 0.0
        %648 = vmatpush1.msra.mxu0 0.0
        %649 = vmatprep.subr.mxu0 0.0
        %650 = vmatpush1.msra.mxu0 0.0
        %651 = vmatprep.subr.mxu0 0.0
        %652 = vmatpush1.msra.mxu0 0.0
        %653 = vmatprep.subr.mxu0 0.0
        %654 = vmatpush1.msra.mxu0 0.0
        %655 = vmatprep.subr.mxu0 0.0
        %656 = vmatpush1.msra.mxu0 0.0
        %657 = vmatprep.subr.mxu0 0.0
        %658 = vmatpush1.msra.mxu0 %v426
        %659 = vmatprep.subr.mxu0 0.0
        %660 = vmatpush2.msra.mxu0 0.0
        %661 = vmatprep.subr.mxu0 0.0
        %662 = vmatpush2.msra.mxu0 0.0
        %663 = vmatprep.subr.mxu0 0.0
        %664 = vmatpush2.msra.mxu0 0.0
        %665 = vmatprep.subr.mxu0 0.0
        %666 = vmatpush2.msra.mxu0 0.0
        %667 = vmatprep.subr.mxu0 0.0
        %668 = vmatpush2.msra.mxu0 0.0
        %669 = vmatprep.subr.mxu0 0.0
        %670 = vmatpush2.msra.mxu0 0.0
        %671 = vmatprep.subr.mxu0 0.0
        %672 = vmatpush2.msra.mxu0 0.0
        %673 = vmatprep.subr.mxu0 0.0
        %674 = vmatpush2.msra.mxu0 0.0
        %675 = vmatprep.subr.mxu0 0.0
        %676 = vmatpush2.msra.mxu0 0.0
        %677 = vmatprep.subr.mxu0 0.0
        %678 = vmatpush2.msra.mxu0 0.0
        %679 = vmatprep.subr.mxu0 0.0
        %680 = vmatpush2.msra.mxu0 0.0
        %681 = vmatprep.subr.mxu0 0.0
        %682 = vmatpush2.msra.mxu0 0.0
        %683 = vmatprep.subr.mxu0 0.0
        %684 = vmatpush2.msra.mxu0 0.0
        %685 = vmatprep.subr.mxu0 0.0
        %686 = vmatpush2.msra.mxu0 0.0
        %687 = vmatprep.subr.mxu0 0.0
        %688 = vmatpush2.msra.mxu0 0.0
        %689 = vmatprep.subr.mxu0 0.0
        %690 = vmatpush2.msra.mxu0 0.0
        %691 = vmatprep.mubr.f32.mxu0 0.0
        %692 = vmatmul.mubr.f32.gmra.mxu0 %v625
        %v693 = vpop.f32.mrf.mxu0
        %v694 = vadd.f32 0.0, %v693
        %v695 = vpop.f32.mrf.mxu0
        %696 = vdwg.mxu0
        %v698 = vsel %vm432, %v623, 0
        %700 = vmatprep.subr.mxu0 0.0
        %701 = vmatpush1.msra.mxu0 0.0
        %702 = vmatprep.subr.mxu0 0.0
        %703 = vmatpush1.msra.mxu0 0.0
        %704 = vmatprep.subr.mxu0 0.0
        %705 = vmatpush1.msra.mxu0 0.0
        %706 = vmatprep.subr.mxu0 0.0
        %707 = vmatpush1.msra.mxu0 0.0
        %708 = vmatprep.subr.mxu0 0.0
        %709 = vmatpush1.msra.mxu0 0.0
        %710 = vmatprep.subr.mxu0 0.0
        %711 = vmatpush1.msra.mxu0 0.0
        %712 = vmatprep.subr.mxu0 0.0
        %713 = vmatpush1.msra.mxu0 0.0
        %714 = vmatprep.subr.mxu0 0.0
        %715 = vmatpush1.msra.mxu0 0.0
        %716 = vmatprep.subr.mxu0 0.0
        %717 = vmatpush1.msra.mxu0 0.0
        %718 = vmatprep.subr.mxu0 0.0
        %719 = vmatpush1.msra.mxu0 0.0
        %720 = vmatprep.subr.mxu0 0.0
        %721 = vmatpush1.msra.mxu0 0.0
        %722 = vmatprep.subr.mxu0 0.0
        %723 = vmatpush1.msra.mxu0 0.0
        %724 = vmatprep.subr.mxu0 0.0
        %725 = vmatpush1.msra.mxu0 0.0
        %726 = vmatprep.subr.mxu0 0.0
        %727 = vmatpush1.msra.mxu0 0.0
        %728 = vmatprep.subr.mxu0 0.0
        %729 = vmatpush1.msra.mxu0 0.0
        %730 = vmatprep.subr.mxu0 0.0
        %731 = vmatpush1.msra.mxu0 %v429
        %732 = vmatprep.subr.mxu0 0.0
        %733 = vmatpush2.msra.mxu0 0.0
        %734 = vmatprep.subr.mxu0 0.0
        %735 = vmatpush2.msra.mxu0 0.0
        %736 = vmatprep.subr.mxu0 0.0
        %737 = vmatpush2.msra.mxu0 0.0
        %738 = vmatprep.subr.mxu0 0.0
        %739 = vmatpush2.msra.mxu0 0.0
        %740 = vmatprep.subr.mxu0 0.0
        %741 = vmatpush2.msra.mxu0 0.0
        %742 = vmatprep.subr.mxu0 0.0
        %743 = vmatpush2.msra.mxu0 0.0
        %744 = vmatprep.subr.mxu0 0.0
        %745 = vmatpush2.msra.mxu0 0.0
        %746 = vmatprep.subr.mxu0 0.0
        %747 = vmatpush2.msra.mxu0 0.0
        %748 = vmatprep.subr.mxu0 0.0
        %749 = vmatpush2.msra.mxu0 0.0
        %750 = vmatprep.subr.mxu0 0.0
        %751 = vmatpush2.msra.mxu0 0.0
        %752 = vmatprep.subr.mxu0 0.0
        %753 = vmatpush2.msra.mxu0 0.0
        %754 = vmatprep.subr.mxu0 0.0
        %755 = vmatpush2.msra.mxu0 0.0
        %756 = vmatprep.subr.mxu0 0.0
        %757 = vmatpush2.msra.mxu0 0.0
        %758 = vmatprep.subr.mxu0 0.0
        %759 = vmatpush2.msra.mxu0 0.0
        %760 = vmatprep.subr.mxu0 0.0
        %761 = vmatpush2.msra.mxu0 0.0
        %762 = vmatprep.subr.mxu0 0.0
        %763 = vmatpush2.msra.mxu0 0.0
        %764 = vmatprep.mubr.f32.mxu0 0.0
        %765 = vmatmul.mubr.f32.gmra.mxu0 %v698
        %v766 = vpop.f32.mrf.mxu0
        %v767 = vadd.f32 0.0, %v766
        %v768 = vpop.f32.mrf.mxu0
        %769 = vdwg.mxu0
        %v770 = vlaneseq
        %v771 = vshrl.u32 %v770, 7
        %v772 = vsub.s32 1, %v771
        %v773 = vrot.slane %v270, %v772
        %v775 = vsel %vm286, %v259, 0
        %777 = vmatprep.subr.bf16.mxu0 0
        %778 = vmatpush1.bf16.xpose.msra.mxu0 0
        %779 = vmatprep.subr.bf16.mxu0 0
        %780 = vmatpush1.bf16.xpose.msra.mxu0 0
        %781 = vmatprep.subr.bf16.mxu0 0
        %782 = vmatpush1.bf16.xpose.msra.mxu0 0
        %783 = vmatprep.subr.bf16.mxu0 0
        %784 = vmatpush1.bf16.xpose.msra.mxu0 0
        %785 = vmatprep.subr.bf16.mxu0 0
        %786 = vmatpush1.bf16.xpose.msra.mxu0 0
        %787 = vmatprep.subr.bf16.mxu0 0
        %788 = vmatpush1.bf16.xpose.msra.mxu0 0
        %789 = vmatprep.subr.bf16.mxu0 0
        %790 = vmatpush1.bf16.xpose.msra.mxu0 0
        %791 = vmatprep.subr.bf16.mxu0 0
        %792 = vmatpush1.bf16.xpose.msra.mxu0 %v775
        %793 = vmatprep.subr.bf16.mxu0 0
        %794 = vmatpush2.bf16.xpose.msra.mxu0 0
        %795 = vmatprep.subr.bf16.mxu0 0
        %796 = vmatpush2.bf16.xpose.msra.mxu0 0
        %797 = vmatprep.subr.bf16.mxu0 0
        %798 = vmatpush2.bf16.xpose.msra.mxu0 0
        %799 = vmatprep.subr.bf16.mxu0 0
        %800 = vmatpush2.bf16.xpose.msra.mxu0 0
        %801 = vmatprep.subr.bf16.mxu0 0
        %802 = vmatpush2.bf16.xpose.msra.mxu0 0
        %803 = vmatprep.subr.bf16.mxu0 0
        %804 = vmatpush2.bf16.xpose.msra.mxu0 0
        %805 = vmatprep.subr.bf16.mxu0 0
        %806 = vmatpush2.bf16.xpose.msra.mxu0 0
        %807 = vmatprep.subr.bf16.mxu0 0
        %808 = vmatpush2.bf16.xpose.msra.mxu0 0
        %809 = vmatprep.mubr.bf16.mxu0 0
        %810 = vmatmul.mubr.bf16.gmra.mxu0 %v288
        %v811 = vpop.f32.mrf.mxu0
        %v812 = vadd.f32 %v773, %v811
        %v813 = vpop.f32.mrf.mxu0
        %v814 = vpop.f32.mrf.mxu0
        %v815 = vadd.f32 %v773, %v814
        %v816 = vpop.f32.mrf.mxu0
        %817 = vdwg.mxu0
        %v818 = vmul.f32 %v812, 0.35355338
        %v819 = vmul.f32 %v815, 0.35355338
        %v820 = vlaneseq
        %v821 = vshrl.u32 %v820, 7
        %v822 = vsub.s32 5, %v821
        %v823 = vrot.slane %v270, %v822
        %v825 = vsel %vm286, %v263, 0
        %827 = vmatprep.subr.bf16.mxu0 0
        %828 = vmatpush1.bf16.xpose.msra.mxu0 0
        %829 = vmatprep.subr.bf16.mxu0 0
        %830 = vmatpush1.bf16.xpose.msra.mxu0 0
        %831 = vmatprep.subr.bf16.mxu0 0
        %832 = vmatpush1.bf16.xpose.msra.mxu0 0
        %833 = vmatprep.subr.bf16.mxu0 0
        %834 = vmatpush1.bf16.xpose.msra.mxu0 0
        %835 = vmatprep.subr.bf16.mxu0 0
        %836 = vmatpush1.bf16.xpose.msra.mxu0 0
        %837 = vmatprep.subr.bf16.mxu0 0
        %838 = vmatpush1.bf16.xpose.msra.mxu0 0
        %839 = vmatprep.subr.bf16.mxu0 0
        %840 = vmatpush1.bf16.xpose.msra.mxu0 0
        %841 = vmatprep.subr.bf16.mxu0 0
        %842 = vmatpush1.bf16.xpose.msra.mxu0 %v825
        %843 = vmatprep.subr.bf16.mxu0 0
        %844 = vmatpush2.bf16.xpose.msra.mxu0 0
        %845 = vmatprep.subr.bf16.mxu0 0
        %846 = vmatpush2.bf16.xpose.msra.mxu0 0
        %847 = vmatprep.subr.bf16.mxu0 0
        %848 = vmatpush2.bf16.xpose.msra.mxu0 0
        %849 = vmatprep.subr.bf16.mxu0 0
        %850 = vmatpush2.bf16.xpose.msra.mxu0 0
        %851 = vmatprep.subr.bf16.mxu0 0
        %852 = vmatpush2.bf16.xpose.msra.mxu0 0
        %853 = vmatprep.subr.bf16.mxu0 0
        %854 = vmatpush2.bf16.xpose.msra.mxu0 0
        %855 = vmatprep.subr.bf16.mxu0 0
        %856 = vmatpush2.bf16.xpose.msra.mxu0 0
        %857 = vmatprep.subr.bf16.mxu0 0
        %858 = vmatpush2.bf16.xpose.msra.mxu0 0
        %859 = vmatprep.mubr.bf16.mxu0 0
        %860 = vmatmul.mubr.bf16.gmra.mxu0 %v288
        %v861 = vpop.f32.mrf.mxu0
        %v862 = vadd.f32 %v823, %v861
        %v863 = vpop.f32.mrf.mxu0
        %v864 = vpop.f32.mrf.mxu0
        %v865 = vadd.f32 %v823, %v864
        %v866 = vpop.f32.mrf.mxu0
        %867 = vdwg.mxu0
        %v868 = vlaneseq
        %v869 = vshrl.u32 %v868, 7
        %v870 = vsub.s32 1, %v869
        %v871 = vrot.slane %v271, %v870
        %v873 = vsel %vm286, %v267, 0
        %875 = vmatprep.subr.bf16.mxu0 0
        %876 = vmatpush1.bf16.xpose.msra.mxu0 0
        %877 = vmatprep.subr.bf16.mxu0 0
        %878 = vmatpush1.bf16.xpose.msra.mxu0 0
        %879 = vmatprep.subr.bf16.mxu0 0
        %880 = vmatpush1.bf16.xpose.msra.mxu0 0
        %881 = vmatprep.subr.bf16.mxu0 0
        %882 = vmatpush1.bf16.xpose.msra.mxu0 0
        %883 = vmatprep.subr.bf16.mxu0 0
        %884 = vmatpush1.bf16.xpose.msra.mxu0 0
        %885 = vmatprep.subr.bf16.mxu0 0
        %886 = vmatpush1.bf16.xpose.msra.mxu0 0
        %887 = vmatprep.subr.bf16.mxu0 0
        %888 = vmatpush1.bf16.xpose.msra.mxu0 0
        %889 = vmatprep.subr.bf16.mxu0 0
        %890 = vmatpush1.bf16.xpose.msra.mxu0 %v873
        %891 = vmatprep.subr.bf16.mxu0 0
        %892 = vmatpush2.bf16.xpose.msra.mxu0 0
        %893 = vmatprep.subr.bf16.mxu0 0
        %894 = vmatpush2.bf16.xpose.msra.mxu0 0
        %895 = vmatprep.subr.bf16.mxu0 0
        %896 = vmatpush2.bf16.xpose.msra.mxu0 0
        %897 = vmatprep.subr.bf16.mxu0 0
        %898 = vmatpush2.bf16.xpose.msra.mxu0 0
        %899 = vmatprep.subr.bf16.mxu0 0
        %900 = vmatpush2.bf16.xpose.msra.mxu0 0
        %901 = vmatprep.subr.bf16.mxu0 0
        %902 = vmatpush2.bf16.xpose.msra.mxu0 0
        %903 = vmatprep.subr.bf16.mxu0 0
        %904 = vmatpush2.bf16.xpose.msra.mxu0 0
        %905 = vmatprep.subr.bf16.mxu0 0
        %906 = vmatpush2.bf16.xpose.msra.mxu0 0
        %907 = vmatprep.mubr.bf16.mxu0 0
        %908 = vmatmul.mubr.bf16.gmra.mxu0 %v288
        %v909 = vpop.f32.mrf.mxu0
        %v910 = vadd.f32 %v871, %v909
        %v911 = vpop.f32.mrf.mxu0
        %v912 = vpop.f32.mrf.mxu0
        %v913 = vadd.f32 %v871, %v912
        %v914 = vpop.f32.mrf.mxu0
        %915 = vdwg.mxu0
        %v917 = vsel %vm432, %v818, 0
        %v920 = vsel %vm432, %v862, 0
        %922 = vmatprep.subr.mxu0 0.0
        %923 = vmatpush1.xpose.msra.mxu0 0.0
        %924 = vmatprep.subr.mxu0 0.0
        %925 = vmatpush1.xpose.msra.mxu0 0.0
        %926 = vmatprep.subr.mxu0 0.0
        %927 = vmatpush1.xpose.msra.mxu0 0.0
        %928 = vmatprep.subr.mxu0 0.0
        %929 = vmatpush1.xpose.msra.mxu0 0.0
        %930 = vmatprep.subr.mxu0 0.0
        %931 = vmatpush1.xpose.msra.mxu0 0.0
        %932 = vmatprep.subr.mxu0 0.0
        %933 = vmatpush1.xpose.msra.mxu0 0.0
        %934 = vmatprep.subr.mxu0 0.0
        %935 = vmatpush1.xpose.msra.mxu0 0.0
        %936 = vmatprep.subr.mxu0 0.0
        %937 = vmatpush1.xpose.msra.mxu0 0.0
        %938 = vmatprep.subr.mxu0 0.0
        %939 = vmatpush1.xpose.msra.mxu0 0.0
        %940 = vmatprep.subr.mxu0 0.0
        %941 = vmatpush1.xpose.msra.mxu0 0.0
        %942 = vmatprep.subr.mxu0 0.0
        %943 = vmatpush1.xpose.msra.mxu0 0.0
        %944 = vmatprep.subr.mxu0 0.0
        %945 = vmatpush1.xpose.msra.mxu0 0.0
        %946 = vmatprep.subr.mxu0 0.0
        %947 = vmatpush1.xpose.msra.mxu0 0.0
        %948 = vmatprep.subr.mxu0 0.0
        %949 = vmatpush1.xpose.msra.mxu0 0.0
        %950 = vmatprep.subr.mxu0 0.0
        %951 = vmatpush1.xpose.msra.mxu0 0.0
        %952 = vmatprep.subr.mxu0 0.0
        %953 = vmatpush1.xpose.msra.mxu0 %v920
        %954 = vmatprep.subr.mxu0 0.0
        %955 = vmatpush2.xpose.msra.mxu0 0.0
        %956 = vmatprep.subr.mxu0 0.0
        %957 = vmatpush2.xpose.msra.mxu0 0.0
        %958 = vmatprep.subr.mxu0 0.0
        %959 = vmatpush2.xpose.msra.mxu0 0.0
        %960 = vmatprep.subr.mxu0 0.0
        %961 = vmatpush2.xpose.msra.mxu0 0.0
        %962 = vmatprep.subr.mxu0 0.0
        %963 = vmatpush2.xpose.msra.mxu0 0.0
        %964 = vmatprep.subr.mxu0 0.0
        %965 = vmatpush2.xpose.msra.mxu0 0.0
        %966 = vmatprep.subr.mxu0 0.0
        %967 = vmatpush2.xpose.msra.mxu0 0.0
        %968 = vmatprep.subr.mxu0 0.0
        %969 = vmatpush2.xpose.msra.mxu0 0.0
        %970 = vmatprep.subr.mxu0 0.0
        %971 = vmatpush2.xpose.msra.mxu0 0.0
        %972 = vmatprep.subr.mxu0 0.0
        %973 = vmatpush2.xpose.msra.mxu0 0.0
        %974 = vmatprep.subr.mxu0 0.0
        %975 = vmatpush2.xpose.msra.mxu0 0.0
        %976 = vmatprep.subr.mxu0 0.0
        %977 = vmatpush2.xpose.msra.mxu0 0.0
        %978 = vmatprep.subr.mxu0 0.0
        %979 = vmatpush2.xpose.msra.mxu0 0.0
        %980 = vmatprep.subr.mxu0 0.0
        %981 = vmatpush2.xpose.msra.mxu0 0.0
        %982 = vmatprep.subr.mxu0 0.0
        %983 = vmatpush2.xpose.msra.mxu0 0.0
        %984 = vmatprep.subr.mxu0 0.0
        %985 = vmatpush2.xpose.msra.mxu0 0.0
        %986 = vmatprep.mubr.f32.mxu0 0.0
        %987 = vmatmul.mubr.f32.gmra.mxu0 %v917
        %v988 = vpop.f32.mrf.mxu0
        %v989 = vadd.f32 0.0, %v988
        %v990 = vpop.f32.mrf.mxu0
        %991 = vdwg.mxu0
        %v993 = vsel %vm432, %v819, 0
        %v996 = vsel %vm432, %v865, 0
        %998 = vmatprep.subr.mxu0 0.0
        %999 = vmatpush1.xpose.msra.mxu0 0.0
        %1000 = vmatprep.subr.mxu0 0.0
        %1001 = vmatpush1.xpose.msra.mxu0 0.0
        %1002 = vmatprep.subr.mxu0 0.0
        %1003 = vmatpush1.xpose.msra.mxu0 0.0
        %1004 = vmatprep.subr.mxu0 0.0
        %1005 = vmatpush1.xpose.msra.mxu0 0.0
        %1006 = vmatprep.subr.mxu0 0.0
        %1007 = vmatpush1.xpose.msra.mxu0 0.0
        %1008 = vmatprep.subr.mxu0 0.0
        %1009 = vmatpush1.xpose.msra.mxu0 0.0
        %1010 = vmatprep.subr.mxu0 0.0
        %1011 = vmatpush1.xpose.msra.mxu0 0.0
        %1012 = vmatprep.subr.mxu0 0.0
        %1013 = vmatpush1.xpose.msra.mxu0 0.0
        %1014 = vmatprep.subr.mxu0 0.0
        %1015 = vmatpush1.xpose.msra.mxu0 0.0
        %1016 = vmatprep.subr.mxu0 0.0
        %1017 = vmatpush1.xpose.msra.mxu0 0.0
        %1018 = vmatprep.subr.mxu0 0.0
        %1019 = vmatpush1.xpose.msra.mxu0 0.0
        %1020 = vmatprep.subr.mxu0 0.0
        %1021 = vmatpush1.xpose.msra.mxu0 0.0
        %1022 = vmatprep.subr.mxu0 0.0
        %1023 = vmatpush1.xpose.msra.mxu0 0.0
        %1024 = vmatprep.subr.mxu0 0.0
        %1025 = vmatpush1.xpose.msra.mxu0 0.0
        %1026 = vmatprep.subr.mxu0 0.0
        %1027 = vmatpush1.xpose.msra.mxu0 0.0
        %1028 = vmatprep.subr.mxu0 0.0
        %1029 = vmatpush1.xpose.msra.mxu0 %v996
        %1030 = vmatprep.subr.mxu0 0.0
        %1031 = vmatpush2.xpose.msra.mxu0 0.0
        %1032 = vmatprep.subr.mxu0 0.0
        %1033 = vmatpush2.xpose.msra.mxu0 0.0
        %1034 = vmatprep.subr.mxu0 0.0
        %1035 = vmatpush2.xpose.msra.mxu0 0.0
        %1036 = vmatprep.subr.mxu0 0.0
        %1037 = vmatpush2.xpose.msra.mxu0 0.0
        %1038 = vmatprep.subr.mxu0 0.0
        %1039 = vmatpush2.xpose.msra.mxu0 0.0
        %1040 = vmatprep.subr.mxu0 0.0
        %1041 = vmatpush2.xpose.msra.mxu0 0.0
        %1042 = vmatprep.subr.mxu0 0.0
        %1043 = vmatpush2.xpose.msra.mxu0 0.0
        %1044 = vmatprep.subr.mxu0 0.0
        %1045 = vmatpush2.xpose.msra.mxu0 0.0
        %1046 = vmatprep.subr.mxu0 0.0
        %1047 = vmatpush2.xpose.msra.mxu0 0.0
        %1048 = vmatprep.subr.mxu0 0.0
        %1049 = vmatpush2.xpose.msra.mxu0 0.0
        %1050 = vmatprep.subr.mxu0 0.0
        %1051 = vmatpush2.xpose.msra.mxu0 0.0
        %1052 = vmatprep.subr.mxu0 0.0
        %1053 = vmatpush2.xpose.msra.mxu0 0.0
        %1054 = vmatprep.subr.mxu0 0.0
        %1055 = vmatpush2.xpose.msra.mxu0 0.0
        %1056 = vmatprep.subr.mxu0 0.0
        %1057 = vmatpush2.xpose.msra.mxu0 0.0
        %1058 = vmatprep.subr.mxu0 0.0
        %1059 = vmatpush2.xpose.msra.mxu0 0.0
        %1060 = vmatprep.subr.mxu0 0.0
        %1061 = vmatpush2.xpose.msra.mxu0 0.0
        %1062 = vmatprep.mubr.f32.mxu0 0.0
        %1063 = vmatmul.mubr.f32.gmra.mxu0 %v993
        %v1064 = vpop.f32.mrf.mxu0
        %v1065 = vadd.f32 0.0, %v1064
        %v1066 = vpop.f32.mrf.mxu0
        %1067 = vdwg.mxu0
        %v1068 = vsel %vm432, %v989, -inf
        %1069 = vmax.xlane.f32.xlu0 %v1068
        %v1070 = vpop.xlane.xlu0 %1069
        %v1071 = vsel %vm432, %v1065, -inf
        %1072 = vmax.xlane.f32.xlu0 %v1071
        %v1073 = vpop.xlane.xlu0 %1072
        %v1074 = vsub.f32 %v989, %v1070
        %v1075 = vsub.f32 %v1065, %v1073
        %v1076 = vmul.f32 %v1074, 1.442695
        %v1077 = vpow.pop %v1076
        %v1078 = vmul.f32 %v1075, 1.442695
        %v1079 = vpow.pop %v1078
        %v1080 = vsel %vm432, %v1077, 0.0
        %1081 = vadd.xlane.f32.xlu0 %v1080
        %v1082 = vpop.xlane.xlu0 %1081
        %v1083 = vsel %vm432, %v1079, 0.0
        %1084 = vadd.xlane.f32.xlu0 %v1083
        %v1085 = vpop.xlane.xlu0 %1084
        %v1086 = vrcp.pop %v1082
        %v1087 = vrcp.pop %v1085
        %v1088 = vmul.f32 %v1077, %v1086
        %v1089 = vmul.f32 %v1079, %v1087
        %v1090 = vsel %vm432, %v1088, 0.0
        %v1091 = vrot.slane %v1090, 4
        %v1092 = vadd.f32 %v1090, %v1091
        %v1093 = vrot.slane %v1092, 2
        %v1094 = vadd.f32 %v1092, %v1093
        %v1095 = vrot.slane %v1094, 1
        %v1096 = vadd.f32 %v1094, %v1095
        %v1097 = vsel %vm432, %v1089, 0.0
        %v1098 = vrot.slane %v1097, 4
        %v1099 = vadd.f32 %v1097, %v1098
        %v1100 = vrot.slane %v1099, 2
        %v1101 = vadd.f32 %v1099, %v1100
        %v1102 = vrot.slane %v1101, 1
        %v1103 = vadd.f32 %v1101, %v1102
        %v1104 = vmul.f32 %v1096, %v621
        %v1105 = vmul.f32 %v1103, %v621
        %v1107 = vsel %vm432, %v1104, 0
        %1109 = vmatprep.subr.mxu0 0.0
        %1110 = vmatpush1.msra.mxu0 0.0
        %1111 = vmatprep.subr.mxu0 0.0
        %1112 = vmatpush1.msra.mxu0 0.0
        %1113 = vmatprep.subr.mxu0 0.0
        %1114 = vmatpush1.msra.mxu0 0.0
        %1115 = vmatprep.subr.mxu0 0.0
        %1116 = vmatpush1.msra.mxu0 0.0
        %1117 = vmatprep.subr.mxu0 0.0
        %1118 = vmatpush1.msra.mxu0 0.0
        %1119 = vmatprep.subr.mxu0 0.0
        %1120 = vmatpush1.msra.mxu0 0.0
        %1121 = vmatprep.subr.mxu0 0.0
        %1122 = vmatpush1.msra.mxu0 0.0
        %1123 = vmatprep.subr.mxu0 0.0
        %1124 = vmatpush1.msra.mxu0 0.0
        %1125 = vmatprep.subr.mxu0 0.0
        %1126 = vmatpush1.msra.mxu0 0.0
        %1127 = vmatprep.subr.mxu0 0.0
        %1128 = vmatpush1.msra.mxu0 0.0
        %1129 = vmatprep.subr.mxu0 0.0
        %1130 = vmatpush1.msra.mxu0 0.0
        %1131 = vmatprep.subr.mxu0 0.0
        %1132 = vmatpush1.msra.mxu0 0.0
        %1133 = vmatprep.subr.mxu0 0.0
        %1134 = vmatpush1.msra.mxu0 0.0
        %1135 = vmatprep.subr.mxu0 0.0
        %1136 = vmatpush1.msra.mxu0 0.0
        %1137 = vmatprep.subr.mxu0 0.0
        %1138 = vmatpush1.msra.mxu0 0.0
        %1139 = vmatprep.subr.mxu0 0.0
        %1140 = vmatpush1.msra.mxu0 %v910
        %1141 = vmatprep.subr.mxu0 0.0
        %1142 = vmatpush2.msra.mxu0 0.0
        %1143 = vmatprep.subr.mxu0 0.0
        %1144 = vmatpush2.msra.mxu0 0.0
        %1145 = vmatprep.subr.mxu0 0.0
        %1146 = vmatpush2.msra.mxu0 0.0
        %1147 = vmatprep.subr.mxu0 0.0
        %1148 = vmatpush2.msra.mxu0 0.0
        %1149 = vmatprep.subr.mxu0 0.0
        %1150 = vmatpush2.msra.mxu0 0.0
        %1151 = vmatprep.subr.mxu0 0.0
        %1152 = vmatpush2.msra.mxu0 0.0
        %1153 = vmatprep.subr.mxu0 0.0
        %1154 = vmatpush2.msra.mxu0 0.0
        %1155 = vmatprep.subr.mxu0 0.0
        %1156 = vmatpush2.msra.mxu0 0.0
        %1157 = vmatprep.subr.mxu0 0.0
        %1158 = vmatpush2.msra.mxu0 0.0
        %1159 = vmatprep.subr.mxu0 0.0
        %1160 = vmatpush2.msra.mxu0 0.0
        %1161 = vmatprep.subr.mxu0 0.0
        %1162 = vmatpush2.msra.mxu0 0.0
        %1163 = vmatprep.subr.mxu0 0.0
        %1164 = vmatpush2.msra.mxu0 0.0
        %1165 = vmatprep.subr.mxu0 0.0
        %1166 = vmatpush2.msra.mxu0 0.0
        %1167 = vmatprep.subr.mxu0 0.0
        %1168 = vmatpush2.msra.mxu0 0.0
        %1169 = vmatprep.subr.mxu0 0.0
        %1170 = vmatpush2.msra.mxu0 0.0
        %1171 = vmatprep.subr.mxu0 0.0
        %1172 = vmatpush2.msra.mxu0 0.0
        %1173 = vmatprep.mubr.f32.mxu0 0.0
        %1174 = vmatmul.mubr.f32.gmra.mxu0 %v1107
        %v1175 = vpop.f32.mrf.mxu0
        %v1176 = vadd.f32 0.0, %v1175
        %v1177 = vpop.f32.mrf.mxu0
        %1178 = vdwg.mxu0
        %v1180 = vsel %vm432, %v1105, 0
        %1182 = vmatprep.subr.mxu0 0.0
        %1183 = vmatpush1.msra.mxu0 0.0
        %1184 = vmatprep.subr.mxu0 0.0
        %1185 = vmatpush1.msra.mxu0 0.0
        %1186 = vmatprep.subr.mxu0 0.0
        %1187 = vmatpush1.msra.mxu0 0.0
        %1188 = vmatprep.subr.mxu0 0.0
        %1189 = vmatpush1.msra.mxu0 0.0
        %1190 = vmatprep.subr.mxu0 0.0
        %1191 = vmatpush1.msra.mxu0 0.0
        %1192 = vmatprep.subr.mxu0 0.0
        %1193 = vmatpush1.msra.mxu0 0.0
        %1194 = vmatprep.subr.mxu0 0.0
        %1195 = vmatpush1.msra.mxu0 0.0
        %1196 = vmatprep.subr.mxu0 0.0
        %1197 = vmatpush1.msra.mxu0 0.0
        %1198 = vmatprep.subr.mxu0 0.0
        %1199 = vmatpush1.msra.mxu0 0.0
        %1200 = vmatprep.subr.mxu0 0.0
        %1201 = vmatpush1.msra.mxu0 0.0
        %1202 = vmatprep.subr.mxu0 0.0
        %1203 = vmatpush1.msra.mxu0 0.0
        %1204 = vmatprep.subr.mxu0 0.0
        %1205 = vmatpush1.msra.mxu0 0.0
        %1206 = vmatprep.subr.mxu0 0.0
        %1207 = vmatpush1.msra.mxu0 0.0
        %1208 = vmatprep.subr.mxu0 0.0
        %1209 = vmatpush1.msra.mxu0 0.0
        %1210 = vmatprep.subr.mxu0 0.0
        %1211 = vmatpush1.msra.mxu0 0.0
        %1212 = vmatprep.subr.mxu0 0.0
        %1213 = vmatpush1.msra.mxu0 %v913
        %1214 = vmatprep.subr.mxu0 0.0
        %1215 = vmatpush2.msra.mxu0 0.0
        %1216 = vmatprep.subr.mxu0 0.0
        %1217 = vmatpush2.msra.mxu0 0.0
        %1218 = vmatprep.subr.mxu0 0.0
        %1219 = vmatpush2.msra.mxu0 0.0
        %1220 = vmatprep.subr.mxu0 0.0
        %1221 = vmatpush2.msra.mxu0 0.0
        %1222 = vmatprep.subr.mxu0 0.0
        %1223 = vmatpush2.msra.mxu0 0.0
        %1224 = vmatprep.subr.mxu0 0.0
        %1225 = vmatpush2.msra.mxu0 0.0
        %1226 = vmatprep.subr.mxu0 0.0
        %1227 = vmatpush2.msra.mxu0 0.0
        %1228 = vmatprep.subr.mxu0 0.0
        %1229 = vmatpush2.msra.mxu0 0.0
        %1230 = vmatprep.subr.mxu0 0.0
        %1231 = vmatpush2.msra.mxu0 0.0
        %1232 = vmatprep.subr.mxu0 0.0
        %1233 = vmatpush2.msra.mxu0 0.0
        %1234 = vmatprep.subr.mxu0 0.0
        %1235 = vmatpush2.msra.mxu0 0.0
        %1236 = vmatprep.subr.mxu0 0.0
        %1237 = vmatpush2.msra.mxu0 0.0
        %1238 = vmatprep.subr.mxu0 0.0
        %1239 = vmatpush2.msra.mxu0 0.0
        %1240 = vmatprep.subr.mxu0 0.0
        %1241 = vmatpush2.msra.mxu0 0.0
        %1242 = vmatprep.subr.mxu0 0.0
        %1243 = vmatpush2.msra.mxu0 0.0
        %1244 = vmatprep.subr.mxu0 0.0
        %1245 = vmatpush2.msra.mxu0 0.0
        %1246 = vmatprep.mubr.f32.mxu0 0.0
        %1247 = vmatmul.mubr.f32.gmra.mxu0 %v1180
        %v1248 = vpop.f32.mrf.mxu0
        %v1249 = vadd.f32 0.0, %v1248
        %v1250 = vpop.f32.mrf.mxu0
        %1251 = vdwg.mxu0
        %v1254 = vrot.slane %v1249, 7
        %vm1255 = vcmask 1041409
        %v1256 = vsel %vm1255, %v1254, %v1176
        %v1257 = vsel %vm432, %v1256, 0
        %1259 = vmatprep.subr.mxu0 0.0
        %1260 = vmatpush1.msra.mxu0 0.0
        %1261 = vmatprep.subr.mxu0 0.0
        %1262 = vmatpush1.msra.mxu0 0.0
        %1263 = vmatprep.subr.mxu0 0.0
        %1264 = vmatpush1.msra.mxu0 0.0
        %1265 = vmatprep.subr.mxu0 0.0
        %1266 = vmatpush1.msra.mxu0 0.0
        %1267 = vmatprep.subr.mxu0 0.0
        %1268 = vmatpush1.msra.mxu0 0.0
        %1269 = vmatprep.subr.mxu0 0.0
        %1270 = vmatpush1.msra.mxu0 0.0
        %1271 = vmatprep.subr.mxu0 0.0
        %1272 = vmatpush1.msra.mxu0 0.0
        %1273 = vmatprep.subr.mxu0 0.0
        %1274 = vmatpush1.msra.mxu0 0.0
        %1275 = vmatprep.subr.mxu0 0.0
        %1276 = vmatpush1.msra.mxu0 0.0
        %1277 = vmatprep.subr.mxu0 0.0
        %1278 = vmatpush1.msra.mxu0 0.0
        %1279 = vmatprep.subr.mxu0 0.0
        %1280 = vmatpush1.msra.mxu0 0.0
        %1281 = vmatprep.subr.mxu0 0.0
        %1282 = vmatpush1.msra.mxu0 0.0
        %1283 = vmatprep.subr.mxu0 0.0
        %1284 = vmatpush1.msra.mxu0 0.0
        %1285 = vmatprep.subr.mxu0 0.0
        %1286 = vmatpush1.msra.mxu0 0.0
        %1287 = vmatprep.subr.mxu0 0.0
        %1288 = vmatpush1.msra.mxu0 0.0
        %1289 = vmatprep.subr.mxu0 0.0
        %1290 = vmatpush1.msra.mxu0 %v273
        %1291 = vmatprep.subr.mxu0 0.0
        %1292 = vmatpush2.msra.mxu0 0.0
        %1293 = vmatprep.subr.mxu0 0.0
        %1294 = vmatpush2.msra.mxu0 0.0
        %1295 = vmatprep.subr.mxu0 0.0
        %1296 = vmatpush2.msra.mxu0 0.0
        %1297 = vmatprep.subr.mxu0 0.0
        %1298 = vmatpush2.msra.mxu0 0.0
        %1299 = vmatprep.subr.mxu0 0.0
        %1300 = vmatpush2.msra.mxu0 0.0
        %1301 = vmatprep.subr.mxu0 0.0
        %1302 = vmatpush2.msra.mxu0 0.0
        %1303 = vmatprep.subr.mxu0 0.0
        %1304 = vmatpush2.msra.mxu0 0.0
        %1305 = vmatprep.subr.mxu0 0.0
        %1306 = vmatpush2.msra.mxu0 0.0
        %1307 = vmatprep.subr.mxu0 0.0
        %1308 = vmatpush2.msra.mxu0 0.0
        %1309 = vmatprep.subr.mxu0 0.0
        %1310 = vmatpush2.msra.mxu0 0.0
        %1311 = vmatprep.subr.mxu0 0.0
        %1312 = vmatpush2.msra.mxu0 0.0
        %1313 = vmatprep.subr.mxu0 0.0
        %1314 = vmatpush2.msra.mxu0 0.0
        %1315 = vmatprep.subr.mxu0 0.0
        %1316 = vmatpush2.msra.mxu0 0.0
        %1317 = vmatprep.subr.mxu0 0.0
        %1318 = vmatpush2.msra.mxu0 0.0
        %1319 = vmatprep.subr.mxu0 0.0
        %1320 = vmatpush2.msra.mxu0 0.0
        %1321 = vmatprep.subr.mxu0 0.0
        %1322 = vmatpush2.msra.mxu0 0.0
        %1323 = vmatprep.mubr.f32.mxu0 0.0
        %1324 = vmatmul.mubr.f32.gmra.mxu0 %v1257
        %v1325 = vpop.f32.mrf.mxu0
        %v1326 = vadd.f32 0.0, %v1325
        %v1327 = vpop.f32.mrf.mxu0
        %1328 = vdwg.mxu0
        %v1331 = vrot.slane %v767, 7
        %v1332 = vsel %vm1255, %v1331, %v694
        %v1333 = vsel %vm432, %v1332, 0
        %1335 = vmatprep.subr.mxu0 0.0
        %1336 = vmatpush1.msra.mxu0 0.0
        %1337 = vmatprep.subr.mxu0 0.0
        %1338 = vmatpush1.msra.mxu0 0.0
        %1339 = vmatprep.subr.mxu0 0.0
        %1340 = vmatpush1.msra.mxu0 0.0
        %1341 = vmatprep.subr.mxu0 0.0
        %1342 = vmatpush1.msra.mxu0 0.0
        %1343 = vmatprep.subr.mxu0 0.0
        %1344 = vmatpush1.msra.mxu0 0.0
        %1345 = vmatprep.subr.mxu0 0.0
        %1346 = vmatpush1.msra.mxu0 0.0
        %1347 = vmatprep.subr.mxu0 0.0
        %1348 = vmatpush1.msra.mxu0 0.0
        %1349 = vmatprep.subr.mxu0 0.0
        %1350 = vmatpush1.msra.mxu0 0.0
        %1351 = vmatprep.subr.mxu0 0.0
        %1352 = vmatpush1.msra.mxu0 0.0
        %1353 = vmatprep.subr.mxu0 0.0
        %1354 = vmatpush1.msra.mxu0 0.0
        %1355 = vmatprep.subr.mxu0 0.0
        %1356 = vmatpush1.msra.mxu0 0.0
        %1357 = vmatprep.subr.mxu0 0.0
        %1358 = vmatpush1.msra.mxu0 0.0
        %1359 = vmatprep.subr.mxu0 0.0
        %1360 = vmatpush1.msra.mxu0 0.0
        %1361 = vmatprep.subr.mxu0 0.0
        %1362 = vmatpush1.msra.mxu0 0.0
        %1363 = vmatprep.subr.mxu0 0.0
        %1364 = vmatpush1.msra.mxu0 0.0
        %1365 = vmatprep.subr.mxu0 0.0
        %1366 = vmatpush1.msra.mxu0 %v272
        %1367 = vmatprep.subr.mxu0 0.0
        %1368 = vmatpush2.msra.mxu0 0.0
        %1369 = vmatprep.subr.mxu0 0.0
        %1370 = vmatpush2.msra.mxu0 0.0
        %1371 = vmatprep.subr.mxu0 0.0
        %1372 = vmatpush2.msra.mxu0 0.0
        %1373 = vmatprep.subr.mxu0 0.0
        %1374 = vmatpush2.msra.mxu0 0.0
        %1375 = vmatprep.subr.mxu0 0.0
        %1376 = vmatpush2.msra.mxu0 0.0
        %1377 = vmatprep.subr.mxu0 0.0
        %1378 = vmatpush2.msra.mxu0 0.0
        %1379 = vmatprep.subr.mxu0 0.0
        %1380 = vmatpush2.msra.mxu0 0.0
        %1381 = vmatprep.subr.mxu0 0.0
        %1382 = vmatpush2.msra.mxu0 0.0
        %1383 = vmatprep.subr.mxu0 0.0
        %1384 = vmatpush2.msra.mxu0 0.0
        %1385 = vmatprep.subr.mxu0 0.0
        %1386 = vmatpush2.msra.mxu0 0.0
        %1387 = vmatprep.subr.mxu0 0.0
        %1388 = vmatpush2.msra.mxu0 0.0
        %1389 = vmatprep.subr.mxu0 0.0
        %1390 = vmatpush2.msra.mxu0 0.0
        %1391 = vmatprep.subr.mxu0 0.0
        %1392 = vmatpush2.msra.mxu0 0.0
        %1393 = vmatprep.subr.mxu0 0.0
        %1394 = vmatpush2.msra.mxu0 0.0
        %1395 = vmatprep.subr.mxu0 0.0
        %1396 = vmatpush2.msra.mxu0 0.0
        %1397 = vmatprep.subr.mxu0 0.0
        %1398 = vmatpush2.msra.mxu0 0.0
        %1399 = vmatprep.mubr.f32.mxu0 0.0
        %1400 = vmatmul.mubr.f32.gmra.mxu0 %v1333
        %v1401 = vpop.f32.mrf.mxu0
        %v1402 = vadd.f32 %v1326, %v1401
        %v1403 = vpop.f32.mrf.mxu0
        %1404 = vdwg.mxu0
        %v1405 = vlaneseq
        %v1406 = vshrl.u32 %v1405, 7
        %v1407 = vsub.s32 2, %v1406
        %v1408 = vrot.slane %v270, %v1407
        %v1410 = vsel %vm286, %v260, 0
        %1412 = vmatprep.subr.bf16.mxu0 0
        %1413 = vmatpush1.bf16.xpose.msra.mxu0 0
        %1414 = vmatprep.subr.bf16.mxu0 0
        %1415 = vmatpush1.bf16.xpose.msra.mxu0 0
        %1416 = vmatprep.subr.bf16.mxu0 0
        %1417 = vmatpush1.bf16.xpose.msra.mxu0 0
        %1418 = vmatprep.subr.bf16.mxu0 0
        %1419 = vmatpush1.bf16.xpose.msra.mxu0 0
        %1420 = vmatprep.subr.bf16.mxu0 0
        %1421 = vmatpush1.bf16.xpose.msra.mxu0 0
        %1422 = vmatprep.subr.bf16.mxu0 0
        %1423 = vmatpush1.bf16.xpose.msra.mxu0 0
        %1424 = vmatprep.subr.bf16.mxu0 0
        %1425 = vmatpush1.bf16.xpose.msra.mxu0 0
        %1426 = vmatprep.subr.bf16.mxu0 0
        %1427 = vmatpush1.bf16.xpose.msra.mxu0 %v1410
        %1428 = vmatprep.subr.bf16.mxu0 0
        %1429 = vmatpush2.bf16.xpose.msra.mxu0 0
        %1430 = vmatprep.subr.bf16.mxu0 0
        %1431 = vmatpush2.bf16.xpose.msra.mxu0 0
        %1432 = vmatprep.subr.bf16.mxu0 0
        %1433 = vmatpush2.bf16.xpose.msra.mxu0 0
        %1434 = vmatprep.subr.bf16.mxu0 0
        %1435 = vmatpush2.bf16.xpose.msra.mxu0 0
        %1436 = vmatprep.subr.bf16.mxu0 0
        %1437 = vmatpush2.bf16.xpose.msra.mxu0 0
        %1438 = vmatprep.subr.bf16.mxu0 0
        %1439 = vmatpush2.bf16.xpose.msra.mxu0 0
        %1440 = vmatprep.subr.bf16.mxu0 0
        %1441 = vmatpush2.bf16.xpose.msra.mxu0 0
        %1442 = vmatprep.subr.bf16.mxu0 0
        %1443 = vmatpush2.bf16.xpose.msra.mxu0 0
        %1444 = vmatprep.mubr.bf16.mxu0 0
        %1445 = vmatmul.mubr.bf16.gmra.mxu0 %v288
        %v1446 = vpop.f32.mrf.mxu0
        %v1447 = vadd.f32 %v1408, %v1446
        %v1448 = vpop.f32.mrf.mxu0
        %v1449 = vpop.f32.mrf.mxu0
        %v1450 = vadd.f32 %v1408, %v1449
        %v1451 = vpop.f32.mrf.mxu0
        %1452 = vdwg.mxu0
        %v1453 = vmul.f32 %v1447, 0.35355338
        %v1454 = vmul.f32 %v1450, 0.35355338
        %v1455 = vlaneseq
        %v1456 = vshrl.u32 %v1455, 7
        %v1457 = vsub.s32 6, %v1456
        %v1458 = vrot.slane %v270, %v1457
        %v1460 = vsel %vm286, %v264, 0
        %1462 = vmatprep.subr.bf16.mxu0 0
        %1463 = vmatpush1.bf16.xpose.msra.mxu0 0
        %1464 = vmatprep.subr.bf16.mxu0 0
        %1465 = vmatpush1.bf16.xpose.msra.mxu0 0
        %1466 = vmatprep.subr.bf16.mxu0 0
        %1467 = vmatpush1.bf16.xpose.msra.mxu0 0
        %1468 = vmatprep.subr.bf16.mxu0 0
        %1469 = vmatpush1.bf16.xpose.msra.mxu0 0
        %1470 = vmatprep.subr.bf16.mxu0 0
        %1471 = vmatpush1.bf16.xpose.msra.mxu0 0
        %1472 = vmatprep.subr.bf16.mxu0 0
        %1473 = vmatpush1.bf16.xpose.msra.mxu0 0
        %1474 = vmatprep.subr.bf16.mxu0 0
        %1475 = vmatpush1.bf16.xpose.msra.mxu0 0
        %1476 = vmatprep.subr.bf16.mxu0 0
        %1477 = vmatpush1.bf16.xpose.msra.mxu0 %v1460
        %1478 = vmatprep.subr.bf16.mxu0 0
        %1479 = vmatpush2.bf16.xpose.msra.mxu0 0
        %1480 = vmatprep.subr.bf16.mxu0 0
        %1481 = vmatpush2.bf16.xpose.msra.mxu0 0
        %1482 = vmatprep.subr.bf16.mxu0 0
        %1483 = vmatpush2.bf16.xpose.msra.mxu0 0
        %1484 = vmatprep.subr.bf16.mxu0 0
        %1485 = vmatpush2.bf16.xpose.msra.mxu0 0
        %1486 = vmatprep.subr.bf16.mxu0 0
        %1487 = vmatpush2.bf16.xpose.msra.mxu0 0
        %1488 = vmatprep.subr.bf16.mxu0 0
        %1489 = vmatpush2.bf16.xpose.msra.mxu0 0
        %1490 = vmatprep.subr.bf16.mxu0 0
        %1491 = vmatpush2.bf16.xpose.msra.mxu0 0
        %1492 = vmatprep.subr.bf16.mxu0 0
        %1493 = vmatpush2.bf16.xpose.msra.mxu0 0
        %1494 = vmatprep.mubr.bf16.mxu0 0
        %1495 = vmatmul.mubr.bf16.gmra.mxu0 %v288
        %v1496 = vpop.f32.mrf.mxu0
        %v1497 = vadd.f32 %v1458, %v1496
        %v1498 = vpop.f32.mrf.mxu0
        %v1499 = vpop.f32.mrf.mxu0
        %v1500 = vadd.f32 %v1458, %v1499
        %v1501 = vpop.f32.mrf.mxu0
        %1502 = vdwg.mxu0
        %v1503 = vlaneseq
        %v1504 = vshrl.u32 %v1503, 7
        %v1505 = vsub.s32 2, %v1504
        %v1506 = vrot.slane %v271, %v1505
        %v1508 = vsel %vm286, %v268, 0
        %1510 = vmatprep.subr.bf16.mxu0 0
        %1511 = vmatpush1.bf16.xpose.msra.mxu0 0
        %1512 = vmatprep.subr.bf16.mxu0 0
        %1513 = vmatpush1.bf16.xpose.msra.mxu0 0
        %1514 = vmatprep.subr.bf16.mxu0 0
        %1515 = vmatpush1.bf16.xpose.msra.mxu0 0
        %1516 = vmatprep.subr.bf16.mxu0 0
        %1517 = vmatpush1.bf16.xpose.msra.mxu0 0
        %1518 = vmatprep.subr.bf16.mxu0 0
        %1519 = vmatpush1.bf16.xpose.msra.mxu0 0
        %1520 = vmatprep.subr.bf16.mxu0 0
        %1521 = vmatpush1.bf16.xpose.msra.mxu0 0
        %1522 = vmatprep.subr.bf16.mxu0 0
        %1523 = vmatpush1.bf16.xpose.msra.mxu0 0
        %1524 = vmatprep.subr.bf16.mxu0 0
        %1525 = vmatpush1.bf16.xpose.msra.mxu0 %v1508
        %1526 = vmatprep.subr.bf16.mxu0 0
        %1527 = vmatpush2.bf16.xpose.msra.mxu0 0
        %1528 = vmatprep.subr.bf16.mxu0 0
        %1529 = vmatpush2.bf16.xpose.msra.mxu0 0
        %1530 = vmatprep.subr.bf16.mxu0 0
        %1531 = vmatpush2.bf16.xpose.msra.mxu0 0
        %1532 = vmatprep.subr.bf16.mxu0 0
        %1533 = vmatpush2.bf16.xpose.msra.mxu0 0
        %1534 = vmatprep.subr.bf16.mxu0 0
        %1535 = vmatpush2.bf16.xpose.msra.mxu0 0
        %1536 = vmatprep.subr.bf16.mxu0 0
        %1537 = vmatpush2.bf16.xpose.msra.mxu0 0
        %1538 = vmatprep.subr.bf16.mxu0 0
        %1539 = vmatpush2.bf16.xpose.msra.mxu0 0
        %1540 = vmatprep.subr.bf16.mxu0 0
        %1541 = vmatpush2.bf16.xpose.msra.mxu0 0
        %1542 = vmatprep.mubr.bf16.mxu0 0
        %1543 = vmatmul.mubr.bf16.gmra.mxu0 %v288
        %v1544 = vpop.f32.mrf.mxu0
        %v1545 = vadd.f32 %v1506, %v1544
        %v1546 = vpop.f32.mrf.mxu0
        %v1547 = vpop.f32.mrf.mxu0
        %v1548 = vadd.f32 %v1506, %v1547
        %v1549 = vpop.f32.mrf.mxu0
        %1550 = vdwg.mxu0
        %v1552 = vsel %vm432, %v1453, 0
        %v1555 = vsel %vm432, %v1497, 0
        %1557 = vmatprep.subr.mxu0 0.0
        %1558 = vmatpush1.xpose.msra.mxu0 0.0
        %1559 = vmatprep.subr.mxu0 0.0
        %1560 = vmatpush1.xpose.msra.mxu0 0.0
        %1561 = vmatprep.subr.mxu0 0.0
        %1562 = vmatpush1.xpose.msra.mxu0 0.0
        %1563 = vmatprep.subr.mxu0 0.0
        %1564 = vmatpush1.xpose.msra.mxu0 0.0
        %1565 = vmatprep.subr.mxu0 0.0
        %1566 = vmatpush1.xpose.msra.mxu0 0.0
        %1567 = vmatprep.subr.mxu0 0.0
        %1568 = vmatpush1.xpose.msra.mxu0 0.0
        %1569 = vmatprep.subr.mxu0 0.0
        %1570 = vmatpush1.xpose.msra.mxu0 0.0
        %1571 = vmatprep.subr.mxu0 0.0
        %1572 = vmatpush1.xpose.msra.mxu0 0.0
        %1573 = vmatprep.subr.mxu0 0.0
        %1574 = vmatpush1.xpose.msra.mxu0 0.0
        %1575 = vmatprep.subr.mxu0 0.0
        %1576 = vmatpush1.xpose.msra.mxu0 0.0
        %1577 = vmatprep.subr.mxu0 0.0
        %1578 = vmatpush1.xpose.msra.mxu0 0.0
        %1579 = vmatprep.subr.mxu0 0.0
        %1580 = vmatpush1.xpose.msra.mxu0 0.0
        %1581 = vmatprep.subr.mxu0 0.0
        %1582 = vmatpush1.xpose.msra.mxu0 0.0
        %1583 = vmatprep.subr.mxu0 0.0
        %1584 = vmatpush1.xpose.msra.mxu0 0.0
        %1585 = vmatprep.subr.mxu0 0.0
        %1586 = vmatpush1.xpose.msra.mxu0 0.0
        %1587 = vmatprep.subr.mxu0 0.0
        %1588 = vmatpush1.xpose.msra.mxu0 %v1555
        %1589 = vmatprep.subr.mxu0 0.0
        %1590 = vmatpush2.xpose.msra.mxu0 0.0
        %1591 = vmatprep.subr.mxu0 0.0
        %1592 = vmatpush2.xpose.msra.mxu0 0.0
        %1593 = vmatprep.subr.mxu0 0.0
        %1594 = vmatpush2.xpose.msra.mxu0 0.0
        %1595 = vmatprep.subr.mxu0 0.0
        %1596 = vmatpush2.xpose.msra.mxu0 0.0
        %1597 = vmatprep.subr.mxu0 0.0
        %1598 = vmatpush2.xpose.msra.mxu0 0.0
        %1599 = vmatprep.subr.mxu0 0.0
        %1600 = vmatpush2.xpose.msra.mxu0 0.0
        %1601 = vmatprep.subr.mxu0 0.0
        %1602 = vmatpush2.xpose.msra.mxu0 0.0
        %1603 = vmatprep.subr.mxu0 0.0
        %1604 = vmatpush2.xpose.msra.mxu0 0.0
        %1605 = vmatprep.subr.mxu0 0.0
        %1606 = vmatpush2.xpose.msra.mxu0 0.0
        %1607 = vmatprep.subr.mxu0 0.0
        %1608 = vmatpush2.xpose.msra.mxu0 0.0
        %1609 = vmatprep.subr.mxu0 0.0
        %1610 = vmatpush2.xpose.msra.mxu0 0.0
        %1611 = vmatprep.subr.mxu0 0.0
        %1612 = vmatpush2.xpose.msra.mxu0 0.0
        %1613 = vmatprep.subr.mxu0 0.0
        %1614 = vmatpush2.xpose.msra.mxu0 0.0
        %1615 = vmatprep.subr.mxu0 0.0
        %1616 = vmatpush2.xpose.msra.mxu0 0.0
        %1617 = vmatprep.subr.mxu0 0.0
        %1618 = vmatpush2.xpose.msra.mxu0 0.0
        %1619 = vmatprep.subr.mxu0 0.0
        %1620 = vmatpush2.xpose.msra.mxu0 0.0
        %1621 = vmatprep.mubr.f32.mxu0 0.0
        %1622 = vmatmul.mubr.f32.gmra.mxu0 %v1552
        %v1623 = vpop.f32.mrf.mxu0
        %v1624 = vadd.f32 0.0, %v1623
        %v1625 = vpop.f32.mrf.mxu0
        %1626 = vdwg.mxu0
        %v1628 = vsel %vm432, %v1454, 0
        %v1631 = vsel %vm432, %v1500, 0
        %1633 = vmatprep.subr.mxu0 0.0
        %1634 = vmatpush1.xpose.msra.mxu0 0.0
        %1635 = vmatprep.subr.mxu0 0.0
        %1636 = vmatpush1.xpose.msra.mxu0 0.0
        %1637 = vmatprep.subr.mxu0 0.0
        %1638 = vmatpush1.xpose.msra.mxu0 0.0
        %1639 = vmatprep.subr.mxu0 0.0
        %1640 = vmatpush1.xpose.msra.mxu0 0.0
        %1641 = vmatprep.subr.mxu0 0.0
        %1642 = vmatpush1.xpose.msra.mxu0 0.0
        %1643 = vmatprep.subr.mxu0 0.0
        %1644 = vmatpush1.xpose.msra.mxu0 0.0
        %1645 = vmatprep.subr.mxu0 0.0
        %1646 = vmatpush1.xpose.msra.mxu0 0.0
        %1647 = vmatprep.subr.mxu0 0.0
        %1648 = vmatpush1.xpose.msra.mxu0 0.0
        %1649 = vmatprep.subr.mxu0 0.0
        %1650 = vmatpush1.xpose.msra.mxu0 0.0
        %1651 = vmatprep.subr.mxu0 0.0
        %1652 = vmatpush1.xpose.msra.mxu0 0.0
        %1653 = vmatprep.subr.mxu0 0.0
        %1654 = vmatpush1.xpose.msra.mxu0 0.0
        %1655 = vmatprep.subr.mxu0 0.0
        %1656 = vmatpush1.xpose.msra.mxu0 0.0
        %1657 = vmatprep.subr.mxu0 0.0
        %1658 = vmatpush1.xpose.msra.mxu0 0.0
        %1659 = vmatprep.subr.mxu0 0.0
        %1660 = vmatpush1.xpose.msra.mxu0 0.0
        %1661 = vmatprep.subr.mxu0 0.0
        %1662 = vmatpush1.xpose.msra.mxu0 0.0
        %1663 = vmatprep.subr.mxu0 0.0
        %1664 = vmatpush1.xpose.msra.mxu0 %v1631
        %1665 = vmatprep.subr.mxu0 0.0
        %1666 = vmatpush2.xpose.msra.mxu0 0.0
        %1667 = vmatprep.subr.mxu0 0.0
        %1668 = vmatpush2.xpose.msra.mxu0 0.0
        %1669 = vmatprep.subr.mxu0 0.0
        %1670 = vmatpush2.xpose.msra.mxu0 0.0
        %1671 = vmatprep.subr.mxu0 0.0
        %1672 = vmatpush2.xpose.msra.mxu0 0.0
        %1673 = vmatprep.subr.mxu0 0.0
        %1674 = vmatpush2.xpose.msra.mxu0 0.0
        %1675 = vmatprep.subr.mxu0 0.0
        %1676 = vmatpush2.xpose.msra.mxu0 0.0
        %1677 = vmatprep.subr.mxu0 0.0
        %1678 = vmatpush2.xpose.msra.mxu0 0.0
        %1679 = vmatprep.subr.mxu0 0.0
        %1680 = vmatpush2.xpose.msra.mxu0 0.0
        %1681 = vmatprep.subr.mxu0 0.0
        %1682 = vmatpush2.xpose.msra.mxu0 0.0
        %1683 = vmatprep.subr.mxu0 0.0
        %1684 = vmatpush2.xpose.msra.mxu0 0.0
        %1685 = vmatprep.subr.mxu0 0.0
        %1686 = vmatpush2.xpose.msra.mxu0 0.0
        %1687 = vmatprep.subr.mxu0 0.0
        %1688 = vmatpush2.xpose.msra.mxu0 0.0
        %1689 = vmatprep.subr.mxu0 0.0
        %1690 = vmatpush2.xpose.msra.mxu0 0.0
        %1691 = vmatprep.subr.mxu0 0.0
        %1692 = vmatpush2.xpose.msra.mxu0 0.0
        %1693 = vmatprep.subr.mxu0 0.0
        %1694 = vmatpush2.xpose.msra.mxu0 0.0
        %1695 = vmatprep.subr.mxu0 0.0
        %1696 = vmatpush2.xpose.msra.mxu0 0.0
        %1697 = vmatprep.mubr.f32.mxu0 0.0
        %1698 = vmatmul.mubr.f32.gmra.mxu0 %v1628
        %v1699 = vpop.f32.mrf.mxu0
        %v1700 = vadd.f32 0.0, %v1699
        %v1701 = vpop.f32.mrf.mxu0
        %1702 = vdwg.mxu0
        %v1703 = vsel %vm432, %v1624, -inf
        %1704 = vmax.xlane.f32.xlu0 %v1703
        %v1705 = vpop.xlane.xlu0 %1704
        %v1706 = vsel %vm432, %v1700, -inf
        %1707 = vmax.xlane.f32.xlu0 %v1706
        %v1708 = vpop.xlane.xlu0 %1707
        %v1709 = vsub.f32 %v1624, %v1705
        %v1710 = vsub.f32 %v1700, %v1708
        %v1711 = vmul.f32 %v1709, 1.442695
        %v1712 = vpow.pop %v1711
        %v1713 = vmul.f32 %v1710, 1.442695
        %v1714 = vpow.pop %v1713
        %v1715 = vsel %vm432, %v1712, 0.0
        %1716 = vadd.xlane.f32.xlu0 %v1715
        %v1717 = vpop.xlane.xlu0 %1716
        %v1718 = vsel %vm432, %v1714, 0.0
        %1719 = vadd.xlane.f32.xlu0 %v1718
        %v1720 = vpop.xlane.xlu0 %1719
        %v1721 = vrcp.pop %v1717
        %v1722 = vrcp.pop %v1720
        %v1723 = vmul.f32 %v1712, %v1721
        %v1724 = vmul.f32 %v1714, %v1722
        %v1725 = vsel %vm432, %v1723, 0.0
        %v1726 = vrot.slane %v1725, 4
        %v1727 = vadd.f32 %v1725, %v1726
        %v1728 = vrot.slane %v1727, 2
        %v1729 = vadd.f32 %v1727, %v1728
        %v1730 = vrot.slane %v1729, 1
        %v1731 = vadd.f32 %v1729, %v1730
        %v1732 = vsel %vm432, %v1724, 0.0
        %v1733 = vrot.slane %v1732, 4
        %v1734 = vadd.f32 %v1732, %v1733
        %v1735 = vrot.slane %v1734, 2
        %v1736 = vadd.f32 %v1734, %v1735
        %v1737 = vrot.slane %v1736, 1
        %v1738 = vadd.f32 %v1736, %v1737
        %v1739 = vmul.f32 %v1731, %v621
        %v1740 = vmul.f32 %v1738, %v621
        %v1742 = vsel %vm432, %v1739, 0
        %1744 = vmatprep.subr.mxu0 0.0
        %1745 = vmatpush1.msra.mxu0 0.0
        %1746 = vmatprep.subr.mxu0 0.0
        %1747 = vmatpush1.msra.mxu0 0.0
        %1748 = vmatprep.subr.mxu0 0.0
        %1749 = vmatpush1.msra.mxu0 0.0
        %1750 = vmatprep.subr.mxu0 0.0
        %1751 = vmatpush1.msra.mxu0 0.0
        %1752 = vmatprep.subr.mxu0 0.0
        %1753 = vmatpush1.msra.mxu0 0.0
        %1754 = vmatprep.subr.mxu0 0.0
        %1755 = vmatpush1.msra.mxu0 0.0
        %1756 = vmatprep.subr.mxu0 0.0
        %1757 = vmatpush1.msra.mxu0 0.0
        %1758 = vmatprep.subr.mxu0 0.0
        %1759 = vmatpush1.msra.mxu0 0.0
        %1760 = vmatprep.subr.mxu0 0.0
        %1761 = vmatpush1.msra.mxu0 0.0
        %1762 = vmatprep.subr.mxu0 0.0
        %1763 = vmatpush1.msra.mxu0 0.0
        %1764 = vmatprep.subr.mxu0 0.0
        %1765 = vmatpush1.msra.mxu0 0.0
        %1766 = vmatprep.subr.mxu0 0.0
        %1767 = vmatpush1.msra.mxu0 0.0
        %1768 = vmatprep.subr.mxu0 0.0
        %1769 = vmatpush1.msra.mxu0 0.0
        %1770 = vmatprep.subr.mxu0 0.0
        %1771 = vmatpush1.msra.mxu0 0.0
        %1772 = vmatprep.subr.mxu0 0.0
        %1773 = vmatpush1.msra.mxu0 0.0
        %1774 = vmatprep.subr.mxu0 0.0
        %1775 = vmatpush1.msra.mxu0 %v1545
        %1776 = vmatprep.subr.mxu0 0.0
        %1777 = vmatpush2.msra.mxu0 0.0
        %1778 = vmatprep.subr.mxu0 0.0
        %1779 = vmatpush2.msra.mxu0 0.0
        %1780 = vmatprep.subr.mxu0 0.0
        %1781 = vmatpush2.msra.mxu0 0.0
        %1782 = vmatprep.subr.mxu0 0.0
        %1783 = vmatpush2.msra.mxu0 0.0
        %1784 = vmatprep.subr.mxu0 0.0
        %1785 = vmatpush2.msra.mxu0 0.0
        %1786 = vmatprep.subr.mxu0 0.0
        %1787 = vmatpush2.msra.mxu0 0.0
        %1788 = vmatprep.subr.mxu0 0.0
        %1789 = vmatpush2.msra.mxu0 0.0
        %1790 = vmatprep.subr.mxu0 0.0
        %1791 = vmatpush2.msra.mxu0 0.0
        %1792 = vmatprep.subr.mxu0 0.0
        %1793 = vmatpush2.msra.mxu0 0.0
        %1794 = vmatprep.subr.mxu0 0.0
        %1795 = vmatpush2.msra.mxu0 0.0
        %1796 = vmatprep.subr.mxu0 0.0
        %1797 = vmatpush2.msra.mxu0 0.0
        %1798 = vmatprep.subr.mxu0 0.0
        %1799 = vmatpush2.msra.mxu0 0.0
        %1800 = vmatprep.subr.mxu0 0.0
        %1801 = vmatpush2.msra.mxu0 0.0
        %1802 = vmatprep.subr.mxu0 0.0
        %1803 = vmatpush2.msra.mxu0 0.0
        %1804 = vmatprep.subr.mxu0 0.0
        %1805 = vmatpush2.msra.mxu0 0.0
        %1806 = vmatprep.subr.mxu0 0.0
        %1807 = vmatpush2.msra.mxu0 0.0
        %1808 = vmatprep.mubr.f32.mxu0 0.0
        %1809 = vmatmul.mubr.f32.gmra.mxu0 %v1742
        %v1810 = vpop.f32.mrf.mxu0
        %v1811 = vadd.f32 0.0, %v1810
        %v1812 = vpop.f32.mrf.mxu0
        %1813 = vdwg.mxu0
        %v1815 = vsel %vm432, %v1740, 0
        %1817 = vmatprep.subr.mxu0 0.0
        %1818 = vmatpush1.msra.mxu0 0.0
        %1819 = vmatprep.subr.mxu0 0.0
        %1820 = vmatpush1.msra.mxu0 0.0
        %1821 = vmatprep.subr.mxu0 0.0
        %1822 = vmatpush1.msra.mxu0 0.0
        %1823 = vmatprep.subr.mxu0 0.0
        %1824 = vmatpush1.msra.mxu0 0.0
        %1825 = vmatprep.subr.mxu0 0.0
        %1826 = vmatpush1.msra.mxu0 0.0
        %1827 = vmatprep.subr.mxu0 0.0
        %1828 = vmatpush1.msra.mxu0 0.0
        %1829 = vmatprep.subr.mxu0 0.0
        %1830 = vmatpush1.msra.mxu0 0.0
        %1831 = vmatprep.subr.mxu0 0.0
        %1832 = vmatpush1.msra.mxu0 0.0
        %1833 = vmatprep.subr.mxu0 0.0
        %1834 = vmatpush1.msra.mxu0 0.0
        %1835 = vmatprep.subr.mxu0 0.0
        %1836 = vmatpush1.msra.mxu0 0.0
        %1837 = vmatprep.subr.mxu0 0.0
        %1838 = vmatpush1.msra.mxu0 0.0
        %1839 = vmatprep.subr.mxu0 0.0
        %1840 = vmatpush1.msra.mxu0 0.0
        %1841 = vmatprep.subr.mxu0 0.0
        %1842 = vmatpush1.msra.mxu0 0.0
        %1843 = vmatprep.subr.mxu0 0.0
        %1844 = vmatpush1.msra.mxu0 0.0
        %1845 = vmatprep.subr.mxu0 0.0
        %1846 = vmatpush1.msra.mxu0 0.0
        %1847 = vmatprep.subr.mxu0 0.0
        %1848 = vmatpush1.msra.mxu0 %v1548
        %1849 = vmatprep.subr.mxu0 0.0
        %1850 = vmatpush2.msra.mxu0 0.0
        %1851 = vmatprep.subr.mxu0 0.0
        %1852 = vmatpush2.msra.mxu0 0.0
        %1853 = vmatprep.subr.mxu0 0.0
        %1854 = vmatpush2.msra.mxu0 0.0
        %1855 = vmatprep.subr.mxu0 0.0
        %1856 = vmatpush2.msra.mxu0 0.0
        %1857 = vmatprep.subr.mxu0 0.0
        %1858 = vmatpush2.msra.mxu0 0.0
        %1859 = vmatprep.subr.mxu0 0.0
        %1860 = vmatpush2.msra.mxu0 0.0
        %1861 = vmatprep.subr.mxu0 0.0
        %1862 = vmatpush2.msra.mxu0 0.0
        %1863 = vmatprep.subr.mxu0 0.0
        %1864 = vmatpush2.msra.mxu0 0.0
        %1865 = vmatprep.subr.mxu0 0.0
        %1866 = vmatpush2.msra.mxu0 0.0
        %1867 = vmatprep.subr.mxu0 0.0
        %1868 = vmatpush2.msra.mxu0 0.0
        %1869 = vmatprep.subr.mxu0 0.0
        %1870 = vmatpush2.msra.mxu0 0.0
        %1871 = vmatprep.subr.mxu0 0.0
        %1872 = vmatpush2.msra.mxu0 0.0
        %1873 = vmatprep.subr.mxu0 0.0
        %1874 = vmatpush2.msra.mxu0 0.0
        %1875 = vmatprep.subr.mxu0 0.0
        %1876 = vmatpush2.msra.mxu0 0.0
        %1877 = vmatprep.subr.mxu0 0.0
        %1878 = vmatpush2.msra.mxu0 0.0
        %1879 = vmatprep.subr.mxu0 0.0
        %1880 = vmatpush2.msra.mxu0 0.0
        %1881 = vmatprep.mubr.f32.mxu0 0.0
        %1882 = vmatmul.mubr.f32.gmra.mxu0 %v1815
        %v1883 = vpop.f32.mrf.mxu0
        %v1884 = vadd.f32 0.0, %v1883
        %v1885 = vpop.f32.mrf.mxu0
        %1886 = vdwg.mxu0
        %v1889 = vrot.slane %v1884, 7
        %v1890 = vsel %vm1255, %v1889, %v1811
        %v1891 = vsel %vm432, %v1890, 0
        %1893 = vmatprep.subr.mxu0 0.0
        %1894 = vmatpush1.msra.mxu0 0.0
        %1895 = vmatprep.subr.mxu0 0.0
        %1896 = vmatpush1.msra.mxu0 0.0
        %1897 = vmatprep.subr.mxu0 0.0
        %1898 = vmatpush1.msra.mxu0 0.0
        %1899 = vmatprep.subr.mxu0 0.0
        %1900 = vmatpush1.msra.mxu0 0.0
        %1901 = vmatprep.subr.mxu0 0.0
        %1902 = vmatpush1.msra.mxu0 0.0
        %1903 = vmatprep.subr.mxu0 0.0
        %1904 = vmatpush1.msra.mxu0 0.0
        %1905 = vmatprep.subr.mxu0 0.0
        %1906 = vmatpush1.msra.mxu0 0.0
        %1907 = vmatprep.subr.mxu0 0.0
        %1908 = vmatpush1.msra.mxu0 0.0
        %1909 = vmatprep.subr.mxu0 0.0
        %1910 = vmatpush1.msra.mxu0 0.0
        %1911 = vmatprep.subr.mxu0 0.0
        %1912 = vmatpush1.msra.mxu0 0.0
        %1913 = vmatprep.subr.mxu0 0.0
        %1914 = vmatpush1.msra.mxu0 0.0
        %1915 = vmatprep.subr.mxu0 0.0
        %1916 = vmatpush1.msra.mxu0 0.0
        %1917 = vmatprep.subr.mxu0 0.0
        %1918 = vmatpush1.msra.mxu0 0.0
        %1919 = vmatprep.subr.mxu0 0.0
        %1920 = vmatpush1.msra.mxu0 0.0
        %1921 = vmatprep.subr.mxu0 0.0
        %1922 = vmatpush1.msra.mxu0 0.0
        %1923 = vmatprep.subr.mxu0 0.0
        %1924 = vmatpush1.msra.mxu0 %v274
        %1925 = vmatprep.subr.mxu0 0.0
        %1926 = vmatpush2.msra.mxu0 0.0
        %1927 = vmatprep.subr.mxu0 0.0
        %1928 = vmatpush2.msra.mxu0 0.0
        %1929 = vmatprep.subr.mxu0 0.0
        %1930 = vmatpush2.msra.mxu0 0.0
        %1931 = vmatprep.subr.mxu0 0.0
        %1932 = vmatpush2.msra.mxu0 0.0
        %1933 = vmatprep.subr.mxu0 0.0
        %1934 = vmatpush2.msra.mxu0 0.0
        %1935 = vmatprep.subr.mxu0 0.0
        %1936 = vmatpush2.msra.mxu0 0.0
        %1937 = vmatprep.subr.mxu0 0.0
        %1938 = vmatpush2.msra.mxu0 0.0
        %1939 = vmatprep.subr.mxu0 0.0
        %1940 = vmatpush2.msra.mxu0 0.0
        %1941 = vmatprep.subr.mxu0 0.0
        %1942 = vmatpush2.msra.mxu0 0.0
        %1943 = vmatprep.subr.mxu0 0.0
        %1944 = vmatpush2.msra.mxu0 0.0
        %1945 = vmatprep.subr.mxu0 0.0
        %1946 = vmatpush2.msra.mxu0 0.0
        %1947 = vmatprep.subr.mxu0 0.0
        %1948 = vmatpush2.msra.mxu0 0.0
        %1949 = vmatprep.subr.mxu0 0.0
        %1950 = vmatpush2.msra.mxu0 0.0
        %1951 = vmatprep.subr.mxu0 0.0
        %1952 = vmatpush2.msra.mxu0 0.0
        %1953 = vmatprep.subr.mxu0 0.0
        %1954 = vmatpush2.msra.mxu0 0.0
        %1955 = vmatprep.subr.mxu0 0.0
        %1956 = vmatpush2.msra.mxu0 0.0
        %1957 = vmatprep.mubr.f32.mxu0 0.0
        %1958 = vmatmul.mubr.f32.gmra.mxu0 %v1891
        %v1959 = vpop.f32.mrf.mxu0
        %v1960 = vadd.f32 0.0, %v1959
        %v1961 = vpop.f32.mrf.mxu0
        %1962 = vdwg.mxu0
        %v1963 = vadd.f32 %v1402, %v1960
        %v1964 = vlaneseq
        %v1965 = vshrl.u32 %v1964, 7
        %v1966 = vsub.s32 3, %v1965
        %v1967 = vrot.slane %v270, %v1966
        %v1969 = vsel %vm286, %v261, 0
        %1971 = vmatprep.subr.bf16.mxu0 0
        %1972 = vmatpush1.bf16.xpose.msra.mxu0 0
        %1973 = vmatprep.subr.bf16.mxu0 0
        %1974 = vmatpush1.bf16.xpose.msra.mxu0 0
        %1975 = vmatprep.subr.bf16.mxu0 0
        %1976 = vmatpush1.bf16.xpose.msra.mxu0 0
        %1977 = vmatprep.subr.bf16.mxu0 0
        %1978 = vmatpush1.bf16.xpose.msra.mxu0 0
        %1979 = vmatprep.subr.bf16.mxu0 0
        %1980 = vmatpush1.bf16.xpose.msra.mxu0 0
        %1981 = vmatprep.subr.bf16.mxu0 0
        %1982 = vmatpush1.bf16.xpose.msra.mxu0 0
        %1983 = vmatprep.subr.bf16.mxu0 0
        %1984 = vmatpush1.bf16.xpose.msra.mxu0 0
        %1985 = vmatprep.subr.bf16.mxu0 0
        %1986 = vmatpush1.bf16.xpose.msra.mxu0 %v1969
        %1987 = vmatprep.subr.bf16.mxu0 0
        %1988 = vmatpush2.bf16.xpose.msra.mxu0 0
        %1989 = vmatprep.subr.bf16.mxu0 0
        %1990 = vmatpush2.bf16.xpose.msra.mxu0 0
        %1991 = vmatprep.subr.bf16.mxu0 0
        %1992 = vmatpush2.bf16.xpose.msra.mxu0 0
        %1993 = vmatprep.subr.bf16.mxu0 0
        %1994 = vmatpush2.bf16.xpose.msra.mxu0 0
        %1995 = vmatprep.subr.bf16.mxu0 0
        %1996 = vmatpush2.bf16.xpose.msra.mxu0 0
        %1997 = vmatprep.subr.bf16.mxu0 0
        %1998 = vmatpush2.bf16.xpose.msra.mxu0 0
        %1999 = vmatprep.subr.bf16.mxu0 0
        %2000 = vmatpush2.bf16.xpose.msra.mxu0 0
        %2001 = vmatprep.subr.bf16.mxu0 0
        %2002 = vmatpush2.bf16.xpose.msra.mxu0 0
        %2003 = vmatprep.mubr.bf16.mxu0 0
        %2004 = vmatmul.mubr.bf16.gmra.mxu0 %v288
        %v2005 = vpop.f32.mrf.mxu0
        %v2006 = vadd.f32 %v1967, %v2005
        %v2007 = vpop.f32.mrf.mxu0
        %v2008 = vpop.f32.mrf.mxu0
        %v2009 = vadd.f32 %v1967, %v2008
        %v2010 = vpop.f32.mrf.mxu0
        %2011 = vdwg.mxu0
        %v2012 = vmul.f32 %v2006, 0.35355338
        %v2013 = vmul.f32 %v2009, 0.35355338
        %v2014 = vlaneseq
        %v2015 = vshrl.u32 %v2014, 7
        %v2016 = vsub.s32 7, %v2015
        %v2017 = vrot.slane %v270, %v2016
        %v2019 = vsel %vm286, %v265, 0
        %2021 = vmatprep.subr.bf16.mxu0 0
        %2022 = vmatpush1.bf16.xpose.msra.mxu0 0
        %2023 = vmatprep.subr.bf16.mxu0 0
        %2024 = vmatpush1.bf16.xpose.msra.mxu0 0
        %2025 = vmatprep.subr.bf16.mxu0 0
        %2026 = vmatpush1.bf16.xpose.msra.mxu0 0
        %2027 = vmatprep.subr.bf16.mxu0 0
        %2028 = vmatpush1.bf16.xpose.msra.mxu0 0
        %2029 = vmatprep.subr.bf16.mxu0 0
        %2030 = vmatpush1.bf16.xpose.msra.mxu0 0
        %2031 = vmatprep.subr.bf16.mxu0 0
        %2032 = vmatpush1.bf16.xpose.msra.mxu0 0
        %2033 = vmatprep.subr.bf16.mxu0 0
        %2034 = vmatpush1.bf16.xpose.msra.mxu0 0
        %2035 = vmatprep.subr.bf16.mxu0 0
        %2036 = vmatpush1.bf16.xpose.msra.mxu0 %v2019
        %2037 = vmatprep.subr.bf16.mxu0 0
        %2038 = vmatpush2.bf16.xpose.msra.mxu0 0
        %2039 = vmatprep.subr.bf16.mxu0 0
        %2040 = vmatpush2.bf16.xpose.msra.mxu0 0
        %2041 = vmatprep.subr.bf16.mxu0 0
        %2042 = vmatpush2.bf16.xpose.msra.mxu0 0
        %2043 = vmatprep.subr.bf16.mxu0 0
        %2044 = vmatpush2.bf16.xpose.msra.mxu0 0
        %2045 = vmatprep.subr.bf16.mxu0 0
        %2046 = vmatpush2.bf16.xpose.msra.mxu0 0
        %2047 = vmatprep.subr.bf16.mxu0 0
        %2048 = vmatpush2.bf16.xpose.msra.mxu0 0
        %2049 = vmatprep.subr.bf16.mxu0 0
        %2050 = vmatpush2.bf16.xpose.msra.mxu0 0
        %2051 = vmatprep.subr.bf16.mxu0 0
        %2052 = vmatpush2.bf16.xpose.msra.mxu0 0
        %2053 = vmatprep.mubr.bf16.mxu0 0
        %2054 = vmatmul.mubr.bf16.gmra.mxu0 %v288
        %v2055 = vpop.f32.mrf.mxu0
        %v2056 = vadd.f32 %v2017, %v2055
        %v2057 = vpop.f32.mrf.mxu0
        %v2058 = vpop.f32.mrf.mxu0
        %v2059 = vadd.f32 %v2017, %v2058
        %v2060 = vpop.f32.mrf.mxu0
        %2061 = vdwg.mxu0
        %v2062 = vlaneseq
        %v2063 = vshrl.u32 %v2062, 7
        %v2064 = vsub.s32 3, %v2063
        %v2065 = vrot.slane %v271, %v2064
        %v2067 = vsel %vm286, %v269, 0
        %2069 = vmatprep.subr.bf16.mxu0 0
        %2070 = vmatpush1.bf16.xpose.msra.mxu0 0
        %2071 = vmatprep.subr.bf16.mxu0 0
        %2072 = vmatpush1.bf16.xpose.msra.mxu0 0
        %2073 = vmatprep.subr.bf16.mxu0 0
        %2074 = vmatpush1.bf16.xpose.msra.mxu0 0
        %2075 = vmatprep.subr.bf16.mxu0 0
        %2076 = vmatpush1.bf16.xpose.msra.mxu0 0
        %2077 = vmatprep.subr.bf16.mxu0 0
        %2078 = vmatpush1.bf16.xpose.msra.mxu0 0
        %2079 = vmatprep.subr.bf16.mxu0 0
        %2080 = vmatpush1.bf16.xpose.msra.mxu0 0
        %2081 = vmatprep.subr.bf16.mxu0 0
        %2082 = vmatpush1.bf16.xpose.msra.mxu0 0
        %2083 = vmatprep.subr.bf16.mxu0 0
        %2084 = vmatpush1.bf16.xpose.msra.mxu0 %v2067
        %2085 = vmatprep.subr.bf16.mxu0 0
        %2086 = vmatpush2.bf16.xpose.msra.mxu0 0
        %2087 = vmatprep.subr.bf16.mxu0 0
        %2088 = vmatpush2.bf16.xpose.msra.mxu0 0
        %2089 = vmatprep.subr.bf16.mxu0 0
        %2090 = vmatpush2.bf16.xpose.msra.mxu0 0
        %2091 = vmatprep.subr.bf16.mxu0 0
        %2092 = vmatpush2.bf16.xpose.msra.mxu0 0
        %2093 = vmatprep.subr.bf16.mxu0 0
        %2094 = vmatpush2.bf16.xpose.msra.mxu0 0
        %2095 = vmatprep.subr.bf16.mxu0 0
        %2096 = vmatpush2.bf16.xpose.msra.mxu0 0
        %2097 = vmatprep.subr.bf16.mxu0 0
        %2098 = vmatpush2.bf16.xpose.msra.mxu0 0
        %2099 = vmatprep.subr.bf16.mxu0 0
        %2100 = vmatpush2.bf16.xpose.msra.mxu0 0
        %2101 = vmatprep.mubr.bf16.mxu0 0
        %2102 = vmatmul.mubr.bf16.gmra.mxu0 %v288
        %v2103 = vpop.f32.mrf.mxu0
        %v2104 = vadd.f32 %v2065, %v2103
        %v2105 = vpop.f32.mrf.mxu0
        %v2106 = vpop.f32.mrf.mxu0
        %v2107 = vadd.f32 %v2065, %v2106
        %v2108 = vpop.f32.mrf.mxu0
        %2109 = vdwg.mxu0
        %v2111 = vsel %vm432, %v2012, 0
        %v2114 = vsel %vm432, %v2056, 0
        %2116 = vmatprep.subr.mxu0 0.0
        %2117 = vmatpush1.xpose.msra.mxu0 0.0
        %2118 = vmatprep.subr.mxu0 0.0
        %2119 = vmatpush1.xpose.msra.mxu0 0.0
        %2120 = vmatprep.subr.mxu0 0.0
        %2121 = vmatpush1.xpose.msra.mxu0 0.0
        %2122 = vmatprep.subr.mxu0 0.0
        %2123 = vmatpush1.xpose.msra.mxu0 0.0
        %2124 = vmatprep.subr.mxu0 0.0
        %2125 = vmatpush1.xpose.msra.mxu0 0.0
        %2126 = vmatprep.subr.mxu0 0.0
        %2127 = vmatpush1.xpose.msra.mxu0 0.0
        %2128 = vmatprep.subr.mxu0 0.0
        %2129 = vmatpush1.xpose.msra.mxu0 0.0
        %2130 = vmatprep.subr.mxu0 0.0
        %2131 = vmatpush1.xpose.msra.mxu0 0.0
        %2132 = vmatprep.subr.mxu0 0.0
        %2133 = vmatpush1.xpose.msra.mxu0 0.0
        %2134 = vmatprep.subr.mxu0 0.0
        %2135 = vmatpush1.xpose.msra.mxu0 0.0
        %2136 = vmatprep.subr.mxu0 0.0
        %2137 = vmatpush1.xpose.msra.mxu0 0.0
        %2138 = vmatprep.subr.mxu0 0.0
        %2139 = vmatpush1.xpose.msra.mxu0 0.0
        %2140 = vmatprep.subr.mxu0 0.0
        %2141 = vmatpush1.xpose.msra.mxu0 0.0
        %2142 = vmatprep.subr.mxu0 0.0
        %2143 = vmatpush1.xpose.msra.mxu0 0.0
        %2144 = vmatprep.subr.mxu0 0.0
        %2145 = vmatpush1.xpose.msra.mxu0 0.0
        %2146 = vmatprep.subr.mxu0 0.0
        %2147 = vmatpush1.xpose.msra.mxu0 %v2114
        %2148 = vmatprep.subr.mxu0 0.0
        %2149 = vmatpush2.xpose.msra.mxu0 0.0
        %2150 = vmatprep.subr.mxu0 0.0
        %2151 = vmatpush2.xpose.msra.mxu0 0.0
        %2152 = vmatprep.subr.mxu0 0.0
        %2153 = vmatpush2.xpose.msra.mxu0 0.0
        %2154 = vmatprep.subr.mxu0 0.0
        %2155 = vmatpush2.xpose.msra.mxu0 0.0
        %2156 = vmatprep.subr.mxu0 0.0
        %2157 = vmatpush2.xpose.msra.mxu0 0.0
        %2158 = vmatprep.subr.mxu0 0.0
        %2159 = vmatpush2.xpose.msra.mxu0 0.0
        %2160 = vmatprep.subr.mxu0 0.0
        %2161 = vmatpush2.xpose.msra.mxu0 0.0
        %2162 = vmatprep.subr.mxu0 0.0
        %2163 = vmatpush2.xpose.msra.mxu0 0.0
        %2164 = vmatprep.subr.mxu0 0.0
        %2165 = vmatpush2.xpose.msra.mxu0 0.0
        %2166 = vmatprep.subr.mxu0 0.0
        %2167 = vmatpush2.xpose.msra.mxu0 0.0
        %2168 = vmatprep.subr.mxu0 0.0
        %2169 = vmatpush2.xpose.msra.mxu0 0.0
        %2170 = vmatprep.subr.mxu0 0.0
        %2171 = vmatpush2.xpose.msra.mxu0 0.0
        %2172 = vmatprep.subr.mxu0 0.0
        %2173 = vmatpush2.xpose.msra.mxu0 0.0
        %2174 = vmatprep.subr.mxu0 0.0
        %2175 = vmatpush2.xpose.msra.mxu0 0.0
        %2176 = vmatprep.subr.mxu0 0.0
        %2177 = vmatpush2.xpose.msra.mxu0 0.0
        %2178 = vmatprep.subr.mxu0 0.0
        %2179 = vmatpush2.xpose.msra.mxu0 0.0
        %2180 = vmatprep.mubr.f32.mxu0 0.0
        %2181 = vmatmul.mubr.f32.gmra.mxu0 %v2111
        %v2182 = vpop.f32.mrf.mxu0
        %v2183 = vadd.f32 0.0, %v2182
        %v2184 = vpop.f32.mrf.mxu0
        %2185 = vdwg.mxu0
        %v2187 = vsel %vm432, %v2013, 0
        %v2190 = vsel %vm432, %v2059, 0
        %2192 = vmatprep.subr.mxu0 0.0
        %2193 = vmatpush1.xpose.msra.mxu0 0.0
        %2194 = vmatprep.subr.mxu0 0.0
        %2195 = vmatpush1.xpose.msra.mxu0 0.0
        %2196 = vmatprep.subr.mxu0 0.0
        %2197 = vmatpush1.xpose.msra.mxu0 0.0
        %2198 = vmatprep.subr.mxu0 0.0
        %2199 = vmatpush1.xpose.msra.mxu0 0.0
        %2200 = vmatprep.subr.mxu0 0.0
        %2201 = vmatpush1.xpose.msra.mxu0 0.0
        %2202 = vmatprep.subr.mxu0 0.0
        %2203 = vmatpush1.xpose.msra.mxu0 0.0
        %2204 = vmatprep.subr.mxu0 0.0
        %2205 = vmatpush1.xpose.msra.mxu0 0.0
        %2206 = vmatprep.subr.mxu0 0.0
        %2207 = vmatpush1.xpose.msra.mxu0 0.0
        %2208 = vmatprep.subr.mxu0 0.0
        %2209 = vmatpush1.xpose.msra.mxu0 0.0
        %2210 = vmatprep.subr.mxu0 0.0
        %2211 = vmatpush1.xpose.msra.mxu0 0.0
        %2212 = vmatprep.subr.mxu0 0.0
        %2213 = vmatpush1.xpose.msra.mxu0 0.0
        %2214 = vmatprep.subr.mxu0 0.0
        %2215 = vmatpush1.xpose.msra.mxu0 0.0
        %2216 = vmatprep.subr.mxu0 0.0
        %2217 = vmatpush1.xpose.msra.mxu0 0.0
        %2218 = vmatprep.subr.mxu0 0.0
        %2219 = vmatpush1.xpose.msra.mxu0 0.0
        %2220 = vmatprep.subr.mxu0 0.0
        %2221 = vmatpush1.xpose.msra.mxu0 0.0
        %2222 = vmatprep.subr.mxu0 0.0
        %2223 = vmatpush1.xpose.msra.mxu0 %v2190
        %2224 = vmatprep.subr.mxu0 0.0
        %2225 = vmatpush2.xpose.msra.mxu0 0.0
        %2226 = vmatprep.subr.mxu0 0.0
        %2227 = vmatpush2.xpose.msra.mxu0 0.0
        %2228 = vmatprep.subr.mxu0 0.0
        %2229 = vmatpush2.xpose.msra.mxu0 0.0
        %2230 = vmatprep.subr.mxu0 0.0
        %2231 = vmatpush2.xpose.msra.mxu0 0.0
        %2232 = vmatprep.subr.mxu0 0.0
        %2233 = vmatpush2.xpose.msra.mxu0 0.0
        %2234 = vmatprep.subr.mxu0 0.0
        %2235 = vmatpush2.xpose.msra.mxu0 0.0
        %2236 = vmatprep.subr.mxu0 0.0
        %2237 = vmatpush2.xpose.msra.mxu0 0.0
        %2238 = vmatprep.subr.mxu0 0.0
        %2239 = vmatpush2.xpose.msra.mxu0 0.0
        %2240 = vmatprep.subr.mxu0 0.0
        %2241 = vmatpush2.xpose.msra.mxu0 0.0
        %2242 = vmatprep.subr.mxu0 0.0
        %2243 = vmatpush2.xpose.msra.mxu0 0.0
        %2244 = vmatprep.subr.mxu0 0.0
        %2245 = vmatpush2.xpose.msra.mxu0 0.0
        %2246 = vmatprep.subr.mxu0 0.0
        %2247 = vmatpush2.xpose.msra.mxu0 0.0
        %2248 = vmatprep.subr.mxu0 0.0
        %2249 = vmatpush2.xpose.msra.mxu0 0.0
        %2250 = vmatprep.subr.mxu0 0.0
        %2251 = vmatpush2.xpose.msra.mxu0 0.0
        %2252 = vmatprep.subr.mxu0 0.0
        %2253 = vmatpush2.xpose.msra.mxu0 0.0
        %2254 = vmatprep.subr.mxu0 0.0
        %2255 = vmatpush2.xpose.msra.mxu0 0.0
        %2256 = vmatprep.mubr.f32.mxu0 0.0
        %2257 = vmatmul.mubr.f32.gmra.mxu0 %v2187
        %v2258 = vpop.f32.mrf.mxu0
        %v2259 = vadd.f32 0.0, %v2258
        %v2260 = vpop.f32.mrf.mxu0
        %2261 = vdwg.mxu0
        %v2262 = vsel %vm432, %v2183, -inf
        %2263 = vmax.xlane.f32.xlu0 %v2262
        %v2264 = vpop.xlane.xlu0 %2263
        %v2265 = vsel %vm432, %v2259, -inf
        %2266 = vmax.xlane.f32.xlu0 %v2265
        %v2267 = vpop.xlane.xlu0 %2266
        %v2268 = vsub.f32 %v2183, %v2264
        %v2269 = vsub.f32 %v2259, %v2267
        %v2270 = vmul.f32 %v2268, 1.442695
        %v2271 = vpow.pop %v2270
        %v2272 = vmul.f32 %v2269, 1.442695
        %v2273 = vpow.pop %v2272
        %v2274 = vsel %vm432, %v2271, 0.0
        %2275 = vadd.xlane.f32.xlu0 %v2274
        %v2276 = vpop.xlane.xlu0 %2275
        %v2277 = vsel %vm432, %v2273, 0.0
        %2278 = vadd.xlane.f32.xlu0 %v2277
        %v2279 = vpop.xlane.xlu0 %2278
        %v2280 = vrcp.pop %v2276
        %v2281 = vrcp.pop %v2279
        %v2282 = vmul.f32 %v2271, %v2280
        %v2283 = vmul.f32 %v2273, %v2281
        %v2284 = vsel %vm432, %v2282, 0.0
        %v2285 = vrot.slane %v2284, 4
        %v2286 = vadd.f32 %v2284, %v2285
        %v2287 = vrot.slane %v2286, 2
        %v2288 = vadd.f32 %v2286, %v2287
        %v2289 = vrot.slane %v2288, 1
        %v2290 = vadd.f32 %v2288, %v2289
        %v2291 = vsel %vm432, %v2283, 0.0
        %v2292 = vrot.slane %v2291, 4
        %v2293 = vadd.f32 %v2291, %v2292
        %v2294 = vrot.slane %v2293, 2
        %v2295 = vadd.f32 %v2293, %v2294
        %v2296 = vrot.slane %v2295, 1
        %v2297 = vadd.f32 %v2295, %v2296
        %v2298 = vmul.f32 %v2290, %v621
        %v2299 = vmul.f32 %v2297, %v621
        %v2301 = vsel %vm432, %v2298, 0
        %2303 = vmatprep.subr.mxu0 0.0
        %2304 = vmatpush1.msra.mxu0 0.0
        %2305 = vmatprep.subr.mxu0 0.0
        %2306 = vmatpush1.msra.mxu0 0.0
        %2307 = vmatprep.subr.mxu0 0.0
        %2308 = vmatpush1.msra.mxu0 0.0
        %2309 = vmatprep.subr.mxu0 0.0
        %2310 = vmatpush1.msra.mxu0 0.0
        %2311 = vmatprep.subr.mxu0 0.0
        %2312 = vmatpush1.msra.mxu0 0.0
        %2313 = vmatprep.subr.mxu0 0.0
        %2314 = vmatpush1.msra.mxu0 0.0
        %2315 = vmatprep.subr.mxu0 0.0
        %2316 = vmatpush1.msra.mxu0 0.0
        %2317 = vmatprep.subr.mxu0 0.0
        %2318 = vmatpush1.msra.mxu0 0.0
        %2319 = vmatprep.subr.mxu0 0.0
        %2320 = vmatpush1.msra.mxu0 0.0
        %2321 = vmatprep.subr.mxu0 0.0
        %2322 = vmatpush1.msra.mxu0 0.0
        %2323 = vmatprep.subr.mxu0 0.0
        %2324 = vmatpush1.msra.mxu0 0.0
        %2325 = vmatprep.subr.mxu0 0.0
        %2326 = vmatpush1.msra.mxu0 0.0
        %2327 = vmatprep.subr.mxu0 0.0
        %2328 = vmatpush1.msra.mxu0 0.0
        %2329 = vmatprep.subr.mxu0 0.0
        %2330 = vmatpush1.msra.mxu0 0.0
        %2331 = vmatprep.subr.mxu0 0.0
        %2332 = vmatpush1.msra.mxu0 0.0
        %2333 = vmatprep.subr.mxu0 0.0
        %2334 = vmatpush1.msra.mxu0 %v2104
        %2335 = vmatprep.subr.mxu0 0.0
        %2336 = vmatpush2.msra.mxu0 0.0
        %2337 = vmatprep.subr.mxu0 0.0
        %2338 = vmatpush2.msra.mxu0 0.0
        %2339 = vmatprep.subr.mxu0 0.0
        %2340 = vmatpush2.msra.mxu0 0.0
        %2341 = vmatprep.subr.mxu0 0.0
        %2342 = vmatpush2.msra.mxu0 0.0
        %2343 = vmatprep.subr.mxu0 0.0
        %2344 = vmatpush2.msra.mxu0 0.0
        %2345 = vmatprep.subr.mxu0 0.0
        %2346 = vmatpush2.msra.mxu0 0.0
        %2347 = vmatprep.subr.mxu0 0.0
        %2348 = vmatpush2.msra.mxu0 0.0
        %2349 = vmatprep.subr.mxu0 0.0
        %2350 = vmatpush2.msra.mxu0 0.0
        %2351 = vmatprep.subr.mxu0 0.0
        %2352 = vmatpush2.msra.mxu0 0.0
        %2353 = vmatprep.subr.mxu0 0.0
        %2354 = vmatpush2.msra.mxu0 0.0
        %2355 = vmatprep.subr.mxu0 0.0
        %2356 = vmatpush2.msra.mxu0 0.0
        %2357 = vmatprep.subr.mxu0 0.0
        %2358 = vmatpush2.msra.mxu0 0.0
        %2359 = vmatprep.subr.mxu0 0.0
        %2360 = vmatpush2.msra.mxu0 0.0
        %2361 = vmatprep.subr.mxu0 0.0
        %2362 = vmatpush2.msra.mxu0 0.0
        %2363 = vmatprep.subr.mxu0 0.0
        %2364 = vmatpush2.msra.mxu0 0.0
        %2365 = vmatprep.subr.mxu0 0.0
        %2366 = vmatpush2.msra.mxu0 0.0
        %2367 = vmatprep.mubr.f32.mxu0 0.0
        %2368 = vmatmul.mubr.f32.gmra.mxu0 %v2301
        %v2369 = vpop.f32.mrf.mxu0
        %v2370 = vadd.f32 0.0, %v2369
        %v2371 = vpop.f32.mrf.mxu0
        %2372 = vdwg.mxu0
        %v2374 = vsel %vm432, %v2299, 0
        %2376 = vmatprep.subr.mxu0 0.0
        %2377 = vmatpush1.msra.mxu0 0.0
        %2378 = vmatprep.subr.mxu0 0.0
        %2379 = vmatpush1.msra.mxu0 0.0
        %2380 = vmatprep.subr.mxu0 0.0
        %2381 = vmatpush1.msra.mxu0 0.0
        %2382 = vmatprep.subr.mxu0 0.0
        %2383 = vmatpush1.msra.mxu0 0.0
        %2384 = vmatprep.subr.mxu0 0.0
        %2385 = vmatpush1.msra.mxu0 0.0
        %2386 = vmatprep.subr.mxu0 0.0
        %2387 = vmatpush1.msra.mxu0 0.0
        %2388 = vmatprep.subr.mxu0 0.0
        %2389 = vmatpush1.msra.mxu0 0.0
        %2390 = vmatprep.subr.mxu0 0.0
        %2391 = vmatpush1.msra.mxu0 0.0
        %2392 = vmatprep.subr.mxu0 0.0
        %2393 = vmatpush1.msra.mxu0 0.0
        %2394 = vmatprep.subr.mxu0 0.0
        %2395 = vmatpush1.msra.mxu0 0.0
        %2396 = vmatprep.subr.mxu0 0.0
        %2397 = vmatpush1.msra.mxu0 0.0
        %2398 = vmatprep.subr.mxu0 0.0
        %2399 = vmatpush1.msra.mxu0 0.0
        %2400 = vmatprep.subr.mxu0 0.0
        %2401 = vmatpush1.msra.mxu0 0.0
        %2402 = vmatprep.subr.mxu0 0.0
        %2403 = vmatpush1.msra.mxu0 0.0
        %2404 = vmatprep.subr.mxu0 0.0
        %2405 = vmatpush1.msra.mxu0 0.0
        %2406 = vmatprep.subr.mxu0 0.0
        %2407 = vmatpush1.msra.mxu0 %v2107
        %2408 = vmatprep.subr.mxu0 0.0
        %2409 = vmatpush2.msra.mxu0 0.0
        %2410 = vmatprep.subr.mxu0 0.0
        %2411 = vmatpush2.msra.mxu0 0.0
        %2412 = vmatprep.subr.mxu0 0.0
        %2413 = vmatpush2.msra.mxu0 0.0
        %2414 = vmatprep.subr.mxu0 0.0
        %2415 = vmatpush2.msra.mxu0 0.0
        %2416 = vmatprep.subr.mxu0 0.0
        %2417 = vmatpush2.msra.mxu0 0.0
        %2418 = vmatprep.subr.mxu0 0.0
        %2419 = vmatpush2.msra.mxu0 0.0
        %2420 = vmatprep.subr.mxu0 0.0
        %2421 = vmatpush2.msra.mxu0 0.0
        %2422 = vmatprep.subr.mxu0 0.0
        %2423 = vmatpush2.msra.mxu0 0.0
        %2424 = vmatprep.subr.mxu0 0.0
        %2425 = vmatpush2.msra.mxu0 0.0
        %2426 = vmatprep.subr.mxu0 0.0
        %2427 = vmatpush2.msra.mxu0 0.0
        %2428 = vmatprep.subr.mxu0 0.0
        %2429 = vmatpush2.msra.mxu0 0.0
        %2430 = vmatprep.subr.mxu0 0.0
        %2431 = vmatpush2.msra.mxu0 0.0
        %2432 = vmatprep.subr.mxu0 0.0
        %2433 = vmatpush2.msra.mxu0 0.0
        %2434 = vmatprep.subr.mxu0 0.0
        %2435 = vmatpush2.msra.mxu0 0.0
        %2436 = vmatprep.subr.mxu0 0.0
        %2437 = vmatpush2.msra.mxu0 0.0
        %2438 = vmatprep.subr.mxu0 0.0
        %2439 = vmatpush2.msra.mxu0 0.0
        %2440 = vmatprep.mubr.f32.mxu0 0.0
        %2441 = vmatmul.mubr.f32.gmra.mxu0 %v2374
        %v2442 = vpop.f32.mrf.mxu0
        %v2443 = vadd.f32 0.0, %v2442
        %v2444 = vpop.f32.mrf.mxu0
        %2445 = vdwg.mxu0
        %v2448 = vrot.slane %v2443, 7
        %v2449 = vsel %vm1255, %v2448, %v2370
        %v2450 = vsel %vm432, %v2449, 0
        %2452 = vmatprep.subr.mxu0 0.0
        %2453 = vmatpush1.msra.mxu0 0.0
        %2454 = vmatprep.subr.mxu0 0.0
        %2455 = vmatpush1.msra.mxu0 0.0
        %2456 = vmatprep.subr.mxu0 0.0
        %2457 = vmatpush1.msra.mxu0 0.0
        %2458 = vmatprep.subr.mxu0 0.0
        %2459 = vmatpush1.msra.mxu0 0.0
        %2460 = vmatprep.subr.mxu0 0.0
        %2461 = vmatpush1.msra.mxu0 0.0
        %2462 = vmatprep.subr.mxu0 0.0
        %2463 = vmatpush1.msra.mxu0 0.0
        %2464 = vmatprep.subr.mxu0 0.0
        %2465 = vmatpush1.msra.mxu0 0.0
        %2466 = vmatprep.subr.mxu0 0.0
        %2467 = vmatpush1.msra.mxu0 0.0
        %2468 = vmatprep.subr.mxu0 0.0
        %2469 = vmatpush1.msra.mxu0 0.0
        %2470 = vmatprep.subr.mxu0 0.0
        %2471 = vmatpush1.msra.mxu0 0.0
        %2472 = vmatprep.subr.mxu0 0.0
        %2473 = vmatpush1.msra.mxu0 0.0
        %2474 = vmatprep.subr.mxu0 0.0
        %2475 = vmatpush1.msra.mxu0 0.0
        %2476 = vmatprep.subr.mxu0 0.0
        %2477 = vmatpush1.msra.mxu0 0.0
        %2478 = vmatprep.subr.mxu0 0.0
        %2479 = vmatpush1.msra.mxu0 0.0
        %2480 = vmatprep.subr.mxu0 0.0
        %2481 = vmatpush1.msra.mxu0 0.0
        %2482 = vmatprep.subr.mxu0 0.0
        %2483 = vmatpush1.msra.mxu0 %v275
        %2484 = vmatprep.subr.mxu0 0.0
        %2485 = vmatpush2.msra.mxu0 0.0
        %2486 = vmatprep.subr.mxu0 0.0
        %2487 = vmatpush2.msra.mxu0 0.0
        %2488 = vmatprep.subr.mxu0 0.0
        %2489 = vmatpush2.msra.mxu0 0.0
        %2490 = vmatprep.subr.mxu0 0.0
        %2491 = vmatpush2.msra.mxu0 0.0
        %2492 = vmatprep.subr.mxu0 0.0
        %2493 = vmatpush2.msra.mxu0 0.0
        %2494 = vmatprep.subr.mxu0 0.0
        %2495 = vmatpush2.msra.mxu0 0.0
        %2496 = vmatprep.subr.mxu0 0.0
        %2497 = vmatpush2.msra.mxu0 0.0
        %2498 = vmatprep.subr.mxu0 0.0
        %2499 = vmatpush2.msra.mxu0 0.0
        %2500 = vmatprep.subr.mxu0 0.0
        %2501 = vmatpush2.msra.mxu0 0.0
        %2502 = vmatprep.subr.mxu0 0.0
        %2503 = vmatpush2.msra.mxu0 0.0
        %2504 = vmatprep.subr.mxu0 0.0
        %2505 = vmatpush2.msra.mxu0 0.0
        %2506 = vmatprep.subr.mxu0 0.0
        %2507 = vmatpush2.msra.mxu0 0.0
        %2508 = vmatprep.subr.mxu0 0.0
        %2509 = vmatpush2.msra.mxu0 0.0
        %2510 = vmatprep.subr.mxu0 0.0
        %2511 = vmatpush2.msra.mxu0 0.0
        %2512 = vmatprep.subr.mxu0 0.0
        %2513 = vmatpush2.msra.mxu0 0.0
        %2514 = vmatprep.subr.mxu0 0.0
        %2515 = vmatpush2.msra.mxu0 0.0
        %2516 = vmatprep.mubr.f32.mxu0 0.0
        %2517 = vmatmul.mubr.f32.gmra.mxu0 %v2450
        %v2518 = vpop.f32.mrf.mxu0
        %v2519 = vadd.f32 0.0, %v2518
        %v2520 = vpop.f32.mrf.mxu0
        %2521 = vdwg.mxu0
        %v2522 = vadd.f32 %v1963, %v2519
        %v2524 = vlaneseq
        %v2525 = vshrl.u32 %v2524, 7
        %v2526 = vsub.s32 0, %v2525
        %v2527 = vrot.slane %v276, %v2526
        %v2529 = vadd.f32 %v2522, %v2527
        %vm2530 = vcmask 254976
        %2531 = vst.msk [vmem:[%s248] sm:$0x3] %vm2530, %v2529
        %s2532 = sand.u32 %s139, 1
        %s2533 = scalar_lea.sflag [#allocation4], %s2532
        %s2534 = sand.u32 %s139, 1
        %s2535 = smul.addr %s2534, 2
        %s2536 = scalar_lea.vmem [#allocation7], %s2535
        // Predicated region
        $region49: #{tpu_custom_call.1} parent=39 // pred_check
          %p2537 = pneg %p149
        $region50: #{tpu_custom_call.1} parent=39 // pred_check_branch
          %2539 = sbr.rel (%p2537) target = $region52
        $region51: #{tpu_custom_call.1} parent=39 // pred_region
          %s2541 = ssub.s32 32, 32
          %2542 = vsyncadd %s2533, %s2541
          %s2543 = smul.addr %s21, 32
          %s2544 = scalar_lea.hbm %s5, %s2543
          %s2546 = sshll.u32 %s2536, 4
          %s2547 = int_to_ptr.vmem [resolvable:$true] %s2546
          %2549 = dma.vmem_to_hbm [thread:$0]  %s2547, 32, %s2544, %s2533
        $region52: #{tpu_custom_call.1} parent=39 // pred_fallthru
          _
      $region40: #{tpu_custom_call.1} parent=5 // pred_fallthru
        _
      %p2550 = scmp.le.s32.totalorder 2, %s16
      // Predicated region
      $region53: #{tpu_custom_call.1} parent=5 // pred_check
        %p2551 = pneg %p2550
      $region54: #{tpu_custom_call.1} parent=5 // pred_check_branch
        %2553 = sbr.rel (%p2551) target = $region56
      $region55: #{tpu_custom_call.1} parent=5 // pred_region
        %s2554 = ssub.s32 %s16, 2
        // Predicated region
        $region57: #{tpu_custom_call.1} parent=55 // pred_check
          %p2555 = pneg %p155
        $region58: #{tpu_custom_call.1} parent=55 // pred_check_branch
          %2557 = sbr.rel (%p2555) target = $region60
        $region59: #{tpu_custom_call.1} parent=55 // pred_region
          %s2558 = sand.u32 %s140, 1
          %s2559 = scalar_lea.sflag [#allocation4], %s2558
          %s2560 = sand.u32 %s140, 1
          %s2561 = smul.addr %s2560, 2
          %s2562 = scalar_lea.vmem [#allocation7], %s2561
          %2563 = dma.done %s2559, 32
        $region60: #{tpu_custom_call.1} parent=55 // pred_fallthru
          _
      $region56: #{tpu_custom_call.1} parent=5 // pred_fallthru
        _
    $region6: #{tpu_custom_call.1} parent=1 // loop_footer
      %s20 = sadd.s32 1, %s16
    $region7: #{tpu_custom_call.1} parent=1 // loop_footer_branch
      %15 = sbr.rel target = $region3
    $region8: #{tpu_custom_call.1} parent=1 // loop_exit
      _
    %2564 = vsyncpa [#allocation3], 1
    %s2565 = scalar_lea.sflag [#allocation3], 1
    %2566 = vsyncpa %s2565, 1
    %2567 = vsyncpa [#allocation6], 1
    %2568 = vsyncpa [#allocation4], 1
    %s2569 = scalar_lea.sflag [#allocation4], 1
    %2570 = vsyncpa %s2569, 1

</llo_original>
